<compile_context>
chip_gen: v7x
topology: tpu7x:2x2x1
jax: 0.10.0
libtpu: 0.0.40
codegen_flags: <defaults>
</compile_context>

<pallas_src>
import functools
import math

import jax
import jax.numpy as jnp
from jax.experimental import pallas as pl
from jax.experimental.pallas import tpu as pltpu


# ----------------------------------------------------------------------------
# Fused kernel: per-(batch, q-tile) multi-head attention + fc_out epilogue.
# ----------------------------------------------------------------------------
def _mha_fused_kernel(q_ref, k_ref, v_ref, mask_ref,
                      wq_ref, wk_ref, wv_ref, wfc_ref, bfc_ref,
                      o_ref,
                      kh_s, vh_s,
                      *, heads, scale):
    """One (batch, q-tile) block.

    q_ref    : (1, TQ, E) f32     query slab
    k_ref    : (1, K,  E) f32     full keys for this batch
    v_ref    : (1, K,  E) f32     full values for this batch
    mask_ref : (1, 1, TQ, K) i32  0 == masked
    wq/wk/wv : (E, E) bf16        pre-transposed block-diagonal projections
    wfc_ref  : (E, E) bf16        pre-transposed fc_out weight
    bfc_ref  : (1, E) f32         fc_out bias
    o_ref    : (1, TQ, E) f32     final output slab
    kh_s/vh_s: (K, E) bf16 VMEM   projected K/V, computed once per batch
    """
    qi = pl.program_id(1)

    # Project K/V once per batch (q axis is the inner "arbitrary" axis, so
    # scratch persists across q-tiles of the same batch).
    @pl.when(qi == 0)
    def _():
        k = k_ref[0].astype(jnp.bfloat16)
        v = v_ref[0].astype(jnp.bfloat16)
        kh_s[...] = jnp.dot(k, wk_ref[...],
                            preferred_element_type=jnp.float32
                            ).astype(jnp.bfloat16)
        vh_s[...] = jnp.dot(v, wv_ref[...],
                            preferred_element_type=jnp.float32
                            ).astype(jnp.bfloat16)

    # Q projection with the softmax scale folded in (cheaper than scaling
    # the (H, TQ, K) energy).
    q = q_ref[0].astype(jnp.bfloat16)                      # (TQ, E)
    qh = jnp.dot(q, wq_ref[...],
                 preferred_element_type=jnp.float32) * scale
    qh = qh.astype(jnp.bfloat16)

    tq, e = qh.shape
    kl = kh_s.shape[0]
    d = e // heads

    # Split heads out of the lane axis once (one transpose each way).
    qh3 = jnp.transpose(qh.reshape(tq, heads, d), (1, 0, 2))          # (H,TQ,D)
    kh3 = jnp.transpose(kh_s[...].reshape(kl, heads, d), (1, 0, 2))   # (H,K, D)
    vh3 = jnp.transpose(vh_s[...].reshape(kl, heads, d), (1, 0, 2))   # (H,K, D)

    # energy[h, q, k] = sum_d qh3[h,q,d] * kh3[h,k,d]   (bf16 in, f32 acc)
    energy = jnp.einsum("hqd,hkd->hqk", qh3, kh3,
                        preferred_element_type=jnp.float32)
    m = mask_ref[0, 0]                                     # (TQ, K) int32
    energy = jnp.where(m[None] == 0, jnp.float32(-1e20), energy)

    # Softmax along K, all f32.
    e_max = jnp.max(energy, axis=-1, keepdims=True)
    p = jnp.exp(energy - e_max)
    denom = jnp.sum(p, axis=-1, keepdims=True)
    inv = pl.reciprocal(denom, approx=True)                # EUP slot
    inv = inv * (2.0 - denom * inv)                        # one Newton step
    attn = (p * inv).astype(jnp.bfloat16)

    out_h = jnp.einsum("hqk,hkd->hqd", attn, vh3,
                       preferred_element_type=jnp.float32)             # (H,TQ,D)
    out = jnp.transpose(out_h, (1, 0, 2)).reshape(tq, e)               # (TQ,E)

    # Fused fc_out epilogue: y = out @ W_fc^T + b   (bf16 operands, f32 acc)
    y = jnp.dot(out.astype(jnp.bfloat16), wfc_ref[...],
                preferred_element_type=jnp.float32) + bfc_ref[...]
    o_ref[0] = y.astype(o_ref.dtype)


def _pick_tile(total, preferred, multiple=8):
    """Largest divisor of `total` that is <= `preferred` and a multiple of
    `multiple` (sublane alignment); falls back to the full extent only when
    no aligned divisor exists."""
    if total <= preferred:
        return total
    for cand in range(preferred, multiple - 1, -1):
        if cand % multiple == 0 and total % cand == 0:
            return cand
    return total


def self_attention_forward(values, keys, query, mask, params,
                           embed_size, heads):
    """values/keys/query: (N, L, E) float32; mask: (N, 1, Q, K) int32."""
    N, value_len, _ = values.shape
    key_len = keys.shape[1]
    query_len = query.shape[1]
    head_dim = embed_size // heads
    assert head_dim * heads == embed_size
    assert key_len == value_len

    # One-time weight prep (outside the kernel): per-head (D, D) weights are
    # expanded to block-diagonal (E, E), pre-transposed, and cast to bf16 so
    # the kernel performs x @ W with bf16 MXU operands and no transposes.
    eye_h = jnp.eye(heads, dtype=jnp.float32)
    wq_bd = jnp.kron(eye_h, params["wq"].T).astype(jnp.bfloat16)   # (E, E)
    wk_bd = jnp.kron(eye_h, params["wk"].T).astype(jnp.bfloat16)   # (E, E)
    wv_bd = jnp.kron(eye_h, params["wv"].T).astype(jnp.bfloat16)   # (E, E)
    w_fc_t = params["w_fc"].T.astype(jnp.bfloat16)                 # (E, E)
    b_fc = params["b_fc"].reshape(1, embed_size).astype(jnp.float32)

    scale = 1.0 / math.sqrt(embed_size)

    tq = _pick_tile(query_len, 512)            # q-tile (inner, stateful axis)
    grid_q = query_len // tq
    assert grid_q * tq == query_len

    kernel = functools.partial(_mha_fused_kernel, heads=heads, scale=scale)

    out = pl.pallas_call(
        kernel,
        out_shape=jax.ShapeDtypeStruct((N, query_len, embed_size),
                                       jnp.float32),
        grid_spec=pltpu.PrefetchScalarGridSpec(
            num_scalar_prefetch=0,
            grid=(N, grid_q),
            in_specs=[
                pl.BlockSpec((1, tq, embed_size),
                             lambda n, qi: (n, qi, 0)),           # q
                pl.BlockSpec((1, key_len, embed_size),
                             lambda n, qi: (n, 0, 0)),            # k
                pl.BlockSpec((1, value_len, embed_size),
                             lambda n, qi: (n, 0, 0)),            # v
                pl.BlockSpec((1, 1, tq, key_len),
                             lambda n, qi: (n, 0, qi, 0)),        # mask
                pl.BlockSpec((embed_size, embed_size),
                             lambda n, qi: (0, 0)),               # wq
                pl.BlockSpec((embed_size, embed_size),
                             lambda n, qi: (0, 0)),               # wk
                pl.BlockSpec((embed_size, embed_size),
                             lambda n, qi: (0, 0)),               # wv
                pl.BlockSpec((embed_size, embed_size),
                             lambda n, qi: (0, 0)),               # w_fc^T
                pl.BlockSpec((1, embed_size),
                             lambda n, qi: (0, 0)),               # b_fc
            ],
            out_specs=pl.BlockSpec((1, tq, embed_size),
                                   lambda n, qi: (n, qi, 0)),
            scratch_shapes=[
                pltpu.VMEM((key_len, embed_size), jnp.bfloat16),  # kh
                pltpu.VMEM((value_len, embed_size), jnp.bfloat16),  # vh
            ],
        ),
        compiler_params=pltpu.CompilerParams(
            dimension_semantics=("parallel", "arbitrary"),
            vmem_limit_bytes=64 * 1024 * 1024),
    )(query, keys, values, mask, wq_bd, wk_bd, wv_bd, w_fc_t, b_fc)

    return out


# ----------------------------------------------------------------------------
# Pure-JAX reference (mirrors the PyTorch forward exactly) for validation.
# ----------------------------------------------------------------------------
def self_attention_ref(values, keys, query, mask, params, embed_size, heads):
    N, value_len, _ = values.shape
    key_len = keys.shape[1]
    query_len = query.shape[1]
    head_dim = embed_size // heads

    v = values.reshape(N, value_len, heads, head_dim) @ params["wv"].T
    k = keys.reshape(N, key_len, heads, head_dim) @ params["wk"].T
    q = query.reshape(N, query_len, heads, head_dim) @ params["wq"].T

    energy = jnp.einsum("nqhd,nkhd->nhqk", q, k)
    energy = jnp.where(mask == 0, jnp.float32(-1e20), energy)
    attn = jax.nn.softmax(energy / math.sqrt(embed_size), axis=-1)
    out = jnp.einsum("nhql,nlhd->nqhd", attn, v).reshape(
        N, query_len, heads * head_dim)
    return out @ params["w_fc"].T + params["b_fc"][0]


if __name__ == "__main__":
    # Small shapes consistent with the module.
    N, seq, embed_size, heads = 2, 8, 32, 4
    head_dim = embed_size // heads

    key = jax.random.PRNGKey(0)
    ks = jax.random.split(key, 8)

    # Deterministic parameter init (nn.Linear-style uniform bounds).
    bd = 1.0 / math.sqrt(head_dim)
    be = 1.0 / math.sqrt(embed_size)
    params = {
        "wv":   jax.random.uniform(ks[0], (head_dim, head_dim), jnp.float32, -bd, bd),
        "wk":   jax.random.uniform(ks[1], (head_dim, head_dim), jnp.float32, -bd, bd),
        "wq":   jax.random.uniform(ks[2], (head_dim, head_dim), jnp.float32, -bd, bd),
        "w_fc": jax.random.uniform(ks[3], (embed_size, embed_size), jnp.float32, -be, be),
        "b_fc": jax.random.uniform(ks[4], (1, embed_size), jnp.float32, -be, be),
    }

    values = jax.random.normal(ks[5], (N, seq, embed_size), jnp.float32)
    keys_in = jax.random.normal(ks[6], (N, seq, embed_size), jnp.float32)
    query = jax.random.normal(ks[7], (N, seq, embed_size), jnp.float32)

    # Causal mask (N, 1, Q, K), broadcasts over heads.
    mask = jnp.tril(jnp.ones((seq, seq), jnp.int32))[None, None].repeat(N, axis=0)

    out = self_attention_forward(values, keys_in, query, mask, params,
                                 embed_size, heads)
    out = jax.block_until_ready(out)

    ref = self_attention_ref(values, keys_in, query, mask, params,
                             embed_size, heads)
    assert out.shape == (N, seq, embed_size)
    # Tolerance accommodates bf16 MXU operands (f32 accumulation / softmax)
    # and the EUP approximate reciprocal + Newton step.
    assert jnp.allclose(out, ref, atol=2e-2, rtol=2e-2), "mismatch vs reference"

    print("KERNEL_OK")
</pallas_src>

<mosaic_0001>
module attributes {stable_mosaic.version = 11 : i64} {
  func.func @_mha_fused_kernel(%arg0: i32, %arg1: i32, %arg2: memref<1x8x32xf32, #tpu.memory_space<vmem>>, %arg3: memref<1x8x32xf32, #tpu.memory_space<vmem>>, %arg4: memref<1x8x32xf32, #tpu.memory_space<vmem>>, %arg5: memref<1x1x8x8xi32, #tpu.memory_space<vmem>>, %arg6: memref<32x32xbf16, #tpu.memory_space<vmem>>, %arg7: memref<32x32xbf16, #tpu.memory_space<vmem>>, %arg8: memref<32x32xbf16, #tpu.memory_space<vmem>>, %arg9: memref<32x32xbf16, #tpu.memory_space<vmem>>, %arg10: memref<1x32xf32, #tpu.memory_space<vmem>>, %arg11: memref<1x8x32xf32, #tpu.memory_space<vmem>>, %arg12: memref<8x32xbf16, #tpu.memory_space<vmem>>, %arg13: memref<8x32xbf16, #tpu.memory_space<vmem>>) attributes {dimension_semantics = [#tpu.dimension_semantics<parallel>, #tpu.dimension_semantics<arbitrary>], iteration_bounds = array<i64: 2, 1>, scalar_prefetch = 0 : i64, scratch_operands = 2 : i64, tpu.core_type = #tpu.core_type<tc>, window_params = [{transform_indices = @transform_0, window_bounds = array<i64: 1, 8, 32>}, {transform_indices = @transform_1, window_bounds = array<i64: 1, 8, 32>}, {transform_indices = @transform_2, window_bounds = array<i64: 1, 8, 32>}, {transform_indices = @transform_3, window_bounds = array<i64: 1, 1, 8, 8>}, {pipeline_mode = #tpu.pipeline_mode<synchronous>, transform_indices = @transform_4, window_bounds = array<i64: 32, 32>}, {pipeline_mode = #tpu.pipeline_mode<synchronous>, transform_indices = @transform_5, window_bounds = array<i64: 32, 32>}, {pipeline_mode = #tpu.pipeline_mode<synchronous>, transform_indices = @transform_6, window_bounds = array<i64: 32, 32>}, {pipeline_mode = #tpu.pipeline_mode<synchronous>, transform_indices = @transform_7, window_bounds = array<i64: 32, 32>}, {pipeline_mode = #tpu.pipeline_mode<synchronous>, transform_indices = @transform_8, window_bounds = array<i64: 1, 32>}, {transform_indices = @transform_9, window_bounds = array<i64: 1, 8, 32>}]} {
    %c0_i32 = arith.constant 0 : i32
    %0 = arith.cmpi eq, %arg1, %c0_i32 : i32
    %1 = arith.extui %0 : i1 to i32
    %c0_i32_0 = arith.constant 0 : i32
    %2 = arith.cmpi ne, %1, %c0_i32_0 : i32
    scf.if %2 {
      %c0_29 = arith.constant 0 : index
      %c0_30 = arith.constant 0 : index
      %c0_31 = arith.constant 0 : index
      %56 = vector.load %arg3[%c0_29, %c0_30, %c0_31] : memref<1x8x32xf32, #tpu.memory_space<vmem>>, vector<1x8x32xf32>
      %57 = vector.shape_cast %56 : vector<1x8x32xf32> to vector<8x32xf32>
      %58 = arith.truncf %57 : vector<8x32xf32> to vector<8x32xbf16>
      %c0_32 = arith.constant 0 : index
      %c0_33 = arith.constant 0 : index
      %c0_34 = arith.constant 0 : index
      %59 = vector.load %arg4[%c0_32, %c0_33, %c0_34] : memref<1x8x32xf32, #tpu.memory_space<vmem>>, vector<1x8x32xf32>
      %60 = vector.shape_cast %59 : vector<1x8x32xf32> to vector<8x32xf32>
      %61 = arith.truncf %60 : vector<8x32xf32> to vector<8x32xbf16>
      %c0_35 = arith.constant 0 : index
      %c0_36 = arith.constant 0 : index
      %62 = vector.load %arg7[%c0_35, %c0_36] : memref<32x32xbf16, #tpu.memory_space<vmem>>, vector<32x32xbf16>
      %cst_37 = arith.constant dense<0.000000e+00> : vector<8x32xf32>
      %63 = tpu.matmul %58, %62, %cst_37 {dimension_numbers = #tpu.dot_dimension_numbers<[1], [0], [0], [1], [0, 0, 1, 1], [], []>} : vector<8x32xbf16>, vector<32x32xbf16>, vector<8x32xf32> -> vector<8x32xf32>
      %64 = arith.truncf %63 : vector<8x32xf32> to vector<8x32xbf16>
      %c0_38 = arith.constant 0 : index
      %c0_39 = arith.constant 0 : index
      %65 = vector.load %arg12[%c0_38, %c0_39] : memref<8x32xbf16, #tpu.memory_space<vmem>>, vector<8x32xbf16>
      tpu.vector_store %arg12[%c0_38, %c0_39], %64 {strides = array<i32>} : memref<8x32xbf16, #tpu.memory_space<vmem>>, vector<8x32xbf16>,
      %c0_40 = arith.constant 0 : index
      %c0_41 = arith.constant 0 : index
      %66 = vector.load %arg8[%c0_40, %c0_41] : memref<32x32xbf16, #tpu.memory_space<vmem>>, vector<32x32xbf16>
      %cst_42 = arith.constant dense<0.000000e+00> : vector<8x32xf32>
      %67 = tpu.matmul %61, %66, %cst_42 {dimension_numbers = #tpu.dot_dimension_numbers<[1], [0], [0], [1], [0, 0, 1, 1], [], []>} : vector<8x32xbf16>, vector<32x32xbf16>, vector<8x32xf32> -> vector<8x32xf32>
      %68 = arith.truncf %67 : vector<8x32xf32> to vector<8x32xbf16>
      %c0_43 = arith.constant 0 : index
      %c0_44 = arith.constant 0 : index
      %69 = vector.load %arg13[%c0_43, %c0_44] : memref<8x32xbf16, #tpu.memory_space<vmem>>, vector<8x32xbf16>
      tpu.vector_store %arg13[%c0_43, %c0_44], %68 {strides = array<i32>} : memref<8x32xbf16, #tpu.memory_space<vmem>>, vector<8x32xbf16>,
    } else {
    }
    %c0 = arith.constant 0 : index
    %c0_1 = arith.constant 0 : index
    %c0_2 = arith.constant 0 : index
    %3 = vector.load %arg2[%c0, %c0_1, %c0_2] : memref<1x8x32xf32, #tpu.memory_space<vmem>>, vector<1x8x32xf32>
    %4 = vector.shape_cast %3 : vector<1x8x32xf32> to vector<8x32xf32>
    %5 = arith.truncf %4 : vector<8x32xf32> to vector<8x32xbf16>
    %c0_3 = arith.constant 0 : index
    %c0_4 = arith.constant 0 : index
    %6 = vector.load %arg6[%c0_3, %c0_4] : memref<32x32xbf16, #tpu.memory_space<vmem>>, vector<32x32xbf16>
    %cst = arith.constant dense<0.000000e+00> : vector<8x32xf32>
    %7 = tpu.matmul %5, %6, %cst {dimension_numbers = #tpu.dot_dimension_numbers<[1], [0], [0], [1], [0, 0, 1, 1], [], []>} : vector<8x32xbf16>, vector<32x32xbf16>, vector<8x32xf32> -> vector<8x32xf32>
    %cst_5 = arith.constant 0.176776692 : f32
    %8 = vector.broadcast %cst_5 : f32 to vector<8x32xf32>
    %9 = arith.mulf %7, %8 : vector<8x32xf32>
    %10 = arith.truncf %9 : vector<8x32xf32> to vector<8x32xbf16>
    %11 = vector.shape_cast %10 : vector<8x32xbf16> to vector<8x4x8xbf16>
    %12 = tpu.transpose %11, [1, 0, 2] : vector<8x4x8xbf16> -> vector<4x8x8xbf16>
    %c0_6 = arith.constant 0 : index
    %c0_7 = arith.constant 0 : index
    %13 = vector.load %arg12[%c0_6, %c0_7] : memref<8x32xbf16, #tpu.memory_space<vmem>>, vector<8x32xbf16>
    %14 = vector.shape_cast %13 : vector<8x32xbf16> to vector<8x4x8xbf16>
    %15 = tpu.transpose %14, [1, 0, 2] : vector<8x4x8xbf16> -> vector<4x8x8xbf16>
    %c0_8 = arith.constant 0 : index
    %c0_9 = arith.constant 0 : index
    %16 = vector.load %arg13[%c0_8, %c0_9] : memref<8x32xbf16, #tpu.memory_space<vmem>>, vector<8x32xbf16>
    %17 = vector.shape_cast %16 : vector<8x32xbf16> to vector<8x4x8xbf16>
    %18 = tpu.transpose %17, [1, 0, 2] : vector<8x4x8xbf16> -> vector<4x8x8xbf16>
    "tpu.trace_start"() <{level = 10 : i32, message = "hqd,hkd->hqk"}> : () -> ()
    %cst_10 = arith.constant dense<0.000000e+00> : vector<4x8x8xf32>
    %19 = tpu.matmul %12, %15, %cst_10 {dimension_numbers = #tpu.dot_dimension_numbers<[2], [2], [1], [1], [0, 0, 0, 1, 1, 1], [0], [0]>} : vector<4x8x8xbf16>, vector<4x8x8xbf16>, vector<4x8x8xf32> -> vector<4x8x8xf32>
    "tpu.trace_stop"() : () -> ()
    %c0_11 = arith.constant 0 : index
    %c0_12 = arith.constant 0 : index
    %c0_13 = arith.constant 0 : index
    %c0_14 = arith.constant 0 : index
    %20 = vector.load %arg5[%c0_11, %c0_12, %c0_13, %c0_14] : memref<1x1x8x8xi32, #tpu.memory_space<vmem>>, vector<1x1x8x8xi32>
    %21 = vector.shape_cast %20 : vector<1x1x8x8xi32> to vector<8x8xi32>
    %22 = vector.shape_cast %21 : vector<8x8xi32> to vector<1x8x8xi32>
    %c0_i32_15 = arith.constant 0 : i32
    %23 = vector.broadcast %c0_i32_15 : i32 to vector<1x8x8xi32>
    %24 = arith.cmpi eq, %22, %23 : vector<1x8x8xi32>
    %cst_16 = arith.constant -1.000000e+20 : f32
    %25 = vector.shape_cast %24 : vector<1x8x8xi1> to vector<1x8x8xi1>
    %26 = vector.broadcast %25 : vector<1x8x8xi1> to vector<4x8x8xi1>
    %27 = vector.broadcast %cst_16 : f32 to vector<4x8x8xf32>
    %28 = arith.select %26, %27, %19 : vector<4x8x8xi1>, vector<4x8x8xf32>
    %cst_17 = arith.constant dense<0xFF800000> : vector<4x8xf32>
    %29 = vector.multi_reduction <maximumf>, %28, %cst_17 [2] : vector<4x8x8xf32> to vector<4x8xf32>
    %30 = vector.shape_cast %29 : vector<4x8xf32> to vector<4x8x1xf32>
    %31 = vector.broadcast %30 : vector<4x8x1xf32> to vector<4x8x8xf32>
    %32 = arith.subf %28, %31 : vector<4x8x8xf32>
    %33 = math.exp %32 : vector<4x8x8xf32>
    %cst_18 = arith.constant dense<0.000000e+00> : vector<4x8xf32>
    %34 = vector.multi_reduction <add>, %33, %cst_18 [2] : vector<4x8x8xf32> to vector<4x8xf32>
    %35 = vector.shape_cast %34 : vector<4x8xf32> to vector<4x8x1xf32>
    %36 = tpu.reciprocal %35 {approx = true} : vector<4x8x1xf32> -> vector<4x8x1xf32>
    %37 = arith.mulf %35, %36 : vector<4x8x1xf32>
    %cst_19 = arith.constant 2.000000e+00 : f32
    %38 = vector.broadcast %cst_19 : f32 to vector<4x8x1xf32>
    %39 = arith.subf %38, %37 : vector<4x8x1xf32>
    %40 = arith.mulf %36, %39 : vector<4x8x1xf32>
    %41 = vector.broadcast %40 : vector<4x8x1xf32> to vector<4x8x8xf32>
    %42 = arith.mulf %33, %41 : vector<4x8x8xf32>
    %43 = arith.truncf %42 : vector<4x8x8xf32> to vector<4x8x8xbf16>
    "tpu.trace_start"() <{level = 10 : i32, message = "hqk,hkd->hqd"}> : () -> ()
    %cst_20 = arith.constant dense<0.000000e+00> : vector<4x8x8xf32>
    %44 = tpu.matmul %43, %18, %cst_20 {dimension_numbers = #tpu.dot_dimension_numbers<[2], [1], [1], [2], [0, 0, 0, 1, 1, 2], [0], [0]>} : vector<4x8x8xbf16>, vector<4x8x8xbf16>, vector<4x8x8xf32> -> vector<4x8x8xf32>
    "tpu.trace_stop"() : () -> ()
    %45 = tpu.transpose %44, [1, 0, 2] : vector<4x8x8xf32> -> vector<8x4x8xf32>
    %46 = vector.shape_cast %45 : vector<8x4x8xf32> to vector<8x32xf32>
    %47 = arith.truncf %46 : vector<8x32xf32> to vector<8x32xbf16>
    %c0_21 = arith.constant 0 : index
    %c0_22 = arith.constant 0 : index
    %48 = vector.load %arg9[%c0_21, %c0_22] : memref<32x32xbf16, #tpu.memory_space<vmem>>, vector<32x32xbf16>
    %cst_23 = arith.constant dense<0.000000e+00> : vector<8x32xf32>
    %49 = tpu.matmul %47, %48, %cst_23 {dimension_numbers = #tpu.dot_dimension_numbers<[1], [0], [0], [1], [0, 0, 1, 1], [], []>} : vector<8x32xbf16>, vector<32x32xbf16>, vector<8x32xf32> -> vector<8x32xf32>
    %c0_24 = arith.constant 0 : index
    %c0_25 = arith.constant 0 : index
    %50 = vector.load %arg10[%c0_24, %c0_25] : memref<1x32xf32, #tpu.memory_space<vmem>>, vector<1x32xf32>
    %51 = vector.broadcast %50 : vector<1x32xf32> to vector<8x32xf32>
    %52 = arith.addf %49, %51 : vector<8x32xf32>
    %c0_26 = arith.constant 0 : index
    %c0_27 = arith.constant 0 : index
    %c0_28 = arith.constant 0 : index
    %53 = vector.load %arg11[%c0_26, %c0_27, %c0_28] : memref<1x8x32xf32, #tpu.memory_space<vmem>>, vector<1x8x32xf32>
    %54 = vector.shape_cast %53 : vector<1x8x32xf32> to vector<8x32xf32>
    %55 = vector.shape_cast %52 : vector<8x32xf32> to vector<1x8x32xf32>
    tpu.vector_store %arg11[%c0_26, %c0_27, %c0_28], %55 {strides = array<i32>} : memref<1x8x32xf32, #tpu.memory_space<vmem>>, vector<1x8x32xf32>,
    return
  }
  func.func @transform_0(%arg0: i32, %arg1: i32) -> (i32, i32, i32) {
    %c0_i32 = arith.constant 0 : i32
    %c0_i32_0 = arith.constant 0 : i32
    return %arg0, %arg1, %c0_i32 : i32, i32, i32
  }
  func.func @transform_1(%arg0: i32, %arg1: i32) -> (i32, i32, i32) {
    %c0_i32 = arith.constant 0 : i32
    %c0_i32_0 = arith.constant 0 : i32
    %c0_i32_1 = arith.constant 0 : i32
    return %arg0, %c0_i32, %c0_i32_0 : i32, i32, i32
  }
  func.func @transform_2(%arg0: i32, %arg1: i32) -> (i32, i32, i32) {
    %c0_i32 = arith.constant 0 : i32
    %c0_i32_0 = arith.constant 0 : i32
    %c0_i32_1 = arith.constant 0 : i32
    return %arg0, %c0_i32, %c0_i32_0 : i32, i32, i32
  }
  func.func @transform_3(%arg0: i32, %arg1: i32) -> (i32, i32, i32, i32) {
    %c0_i32 = arith.constant 0 : i32
    %c0_i32_0 = arith.constant 0 : i32
    %c0_i32_1 = arith.constant 0 : i32
    return %arg0, %c0_i32, %arg1, %c0_i32_0 : i32, i32, i32, i32
  }
  func.func @transform_4(%arg0: i32, %arg1: i32) -> (i32, i32) {
    %c0_i32 = arith.constant 0 : i32
    %c0_i32_0 = arith.constant 0 : i32
    %c0_i32_1 = arith.constant 0 : i32
    return %c0_i32, %c0_i32_0 : i32, i32
  }
  func.func @transform_5(%arg0: i32, %arg1: i32) -> (i32, i32) {
    %c0_i32 = arith.constant 0 : i32
    %c0_i32_0 = arith.constant 0 : i32
    %c0_i32_1 = arith.constant 0 : i32
    return %c0_i32, %c0_i32_0 : i32, i32
  }
  func.func @transform_6(%arg0: i32, %arg1: i32) -> (i32, i32) {
    %c0_i32 = arith.constant 0 : i32
    %c0_i32_0 = arith.constant 0 : i32
    %c0_i32_1 = arith.constant 0 : i32
    return %c0_i32, %c0_i32_0 : i32, i32
  }
  func.func @transform_7(%arg0: i32, %arg1: i32) -> (i32, i32) {
    %c0_i32 = arith.constant 0 : i32
    %c0_i32_0 = arith.constant 0 : i32
    %c0_i32_1 = arith.constant 0 : i32
    return %c0_i32, %c0_i32_0 : i32, i32
  }
  func.func @transform_8(%arg0: i32, %arg1: i32) -> (i32, i32) {
    %c0_i32 = arith.constant 0 : i32
    %c0_i32_0 = arith.constant 0 : i32
    %c0_i32_1 = arith.constant 0 : i32
    return %c0_i32, %c0_i32_0 : i32, i32
  }
  func.func @transform_9(%arg0: i32, %arg1: i32) -> (i32, i32, i32) {
    %c0_i32 = arith.constant 0 : i32
    %c0_i32_0 = arith.constant 0 : i32
    return %arg0, %arg1, %c0_i32 : i32, i32, i32
  }
}

</mosaic_0001>

<llo_original>
// kernel: tpu_custom_call.1
$region0: #{tpu_custom_call.1}
  #allocation0 [shape = 'u32[]', space=smem, size = 0x4, offset = 0x4, fixed_abs, tag = 'smem constant byte address 0x4 - core index']
  #allocation1 [shape = 'u32[144,128]{1,0:T(1,128)}', space=vmem, size = 0x12000, scoped, tag = 'internal scratch']
  #allocation2 [shape = 'bf16[8,32]{1,0:T(8,128)(2,1)}', space=vmem, size = 0x800, scoped, tag = 'scratch operand']
  #allocation3 [shape = 'bf16[8,32]{1,0:T(8,128)(2,1)}', space=vmem, size = 0x800, scoped, tag = 'scratch operand']
  %s0 = inlined_call_operand.hbm [shape: f32[2,8,32], index: 0, kind: input, shape index: {}]
  %s1 = inlined_call_operand.hbm [shape: f32[2,8,32], index: 1, kind: input, shape index: {}]
  %s2 = inlined_call_operand.hbm [shape: f32[2,8,32], index: 2, kind: input, shape index: {}]
  %s3 = inlined_call_operand.hbm [shape: s32[2,1,8,8], index: 3, kind: input, shape index: {}]
  %s4 = inlined_call_operand.hbm [shape: bf16[32,32], index: 4, kind: input, shape index: {}]
  %s5 = inlined_call_operand.hbm [shape: bf16[32,32], index: 5, kind: input, shape index: {}]
  %s6 = inlined_call_operand.hbm [shape: bf16[32,32], index: 6, kind: input, shape index: {}]
  %s7 = inlined_call_operand.hbm [shape: bf16[32,32], index: 7, kind: input, shape index: {}]
  %s8 = inlined_call_operand.hbm [shape: f32[1,32], index: 8, kind: input, shape index: {}]
  %s9 = inlined_call_operand.hbm [shape: f32[2,8,32], index: 9, kind: output, shape index: {}]
  %s10 = sld [smem:[#allocation0]]
  $region109: #{tpu_custom_call.1} parent=0
    _
  %s12 = ssub.s32 1, %s10
  %s13 = scalar_select 0, %s12, %s10
  $region1: #{tpu_custom_call.1} parent=0
    #allocation4 [shape = 'u8[8192]{0}', space=vmem, size = 0x2000, scoped, tag = 'input window, operand 0']
    #allocation5 [shape = 's32[2]{0}', space=sflag, size = 0x8, scoped, tag = 'scoped memory for tpu_custom_call.1']
    #allocation6 [shape = 's32[2]{0}', space=sflag, size = 0x8, scoped, tag = 'scoped memory for tpu_custom_call.1']
    #allocation7 [shape = 'u8[8192]{0}', space=vmem, size = 0x2000, scoped, tag = 'input window, operand 1']
    #allocation8 [shape = 's32[2]{0}', space=sflag, size = 0x8, scoped, tag = 'scoped memory for tpu_custom_call.1']
    #allocation9 [shape = 'u8[8192]{0}', space=vmem, size = 0x2000, scoped, tag = 'input window, operand 2']
    #allocation10 [shape = 'u8[8192]{0}', space=vmem, size = 0x2000, scoped, tag = 'input window, operand 3']
    #allocation11 [shape = 's32[2]{0}', space=sflag, size = 0x8, scoped, tag = 'scoped memory for tpu_custom_call.1']
    #allocation12 [shape = 'u8[8192]{0}', space=vmem, size = 0x2000, scoped, tag = 'input window, operand 4, single buffered']
    #allocation13 [shape = 'u8[8192]{0}', space=vmem, size = 0x2000, scoped, tag = 'input window, operand 5, single buffered']
    #allocation14 [shape = 's32[1]{0}', space=sflag, size = 0x4, scoped, tag = 'scoped memory for tpu_custom_call.1']
    #allocation15 [shape = 'u8[8192]{0}', space=vmem, size = 0x2000, scoped, tag = 'input window, operand 6, single buffered']
    #allocation16 [shape = 'u8[8192]{0}', space=vmem, size = 0x2000, scoped, tag = 'input window, operand 7, single buffered']
    #allocation17 [shape = 's32[1]{0}', space=sflag, size = 0x4, scoped, tag = 'scoped memory for tpu_custom_call.1']
    #allocation18 [shape = 'u8[512]{0}', space=vmem, size = 0x400, scoped, tag = 'input window, operand 8, single buffered']
    #allocation19 [shape = 'u8[8192]{0}', space=vmem, size = 0x2000, scoped, tag = 'output window, operand 0']
    %14 = vsyncpa [#allocation5], 0
    %s15 = scalar_lea.sflag [#allocation5], 1
    %16 = vsyncpa %s15, 0
    %17 = vsyncpa [#allocation8], 0
    %s18 = scalar_lea.sflag [#allocation8], 1
    %19 = vsyncpa %s18, 0
    %20 = vsyncpa [#allocation11], 0
    %s21 = scalar_lea.sflag [#allocation11], 1
    %22 = vsyncpa %s21, 0
    %23 = vsyncpa [#allocation14], 0
    %24 = vsyncpa [#allocation17], 0
    %25 = vsyncpa [#allocation6], 0
    %s26 = scalar_lea.sflag [#allocation6], 1
    %27 = vsyncpa %s26, 0
    loop: start=0, step=1, limit=4
    $region2: #{tpu_custom_call.1} parent=1 // loop_pre_header
      _
    $region3: #{tpu_custom_call.1} parent=1 // loop_header
      %s29 = sphi 0, %s33
      %p30 = scmp.ge.s32.totalorder %s29, 4
      %s36 = sphi 0, %s48
      %s37 = sphi 0, %s44
      %s38 = sphi 0, %s36
      %s39 = sphi 0, %s37
      %s40 = sphi 0, %s38
      %s41 = sphi 0, %s39
      %s53 = sphi 0, %s55
      %s56 = sphi 0, %s53
      %s57 = sphi 0, %s56
      %s73 = sphi 0, %s57
      %s79 = sphi 0, %s81
      %s82 = sphi 0, %s79
      %s83 = sphi 0, %s82
      %s99 = sphi 0, %s83
      %s105 = sphi 0, %s107
      %s108 = sphi 0, %s105
      %s109 = sphi 0, %s108
      %s125 = sphi 0, %s109
      %s133 = sphi 0, %s135
      %s136 = sphi 0, %s133
      %s137 = sphi 0, %s136
      %s153 = sphi 0, %s137
      %s157 = sphi 0, %s157
      %s159 = sphi 0, %s157
      %s160 = sphi 0, %s159
      %s174 = sphi 0, %s160
      %s178 = sphi 0, %s178
      %s180 = sphi 0, %s178
      %s181 = sphi 0, %s180
      %s195 = sphi 0, %s181
      %s199 = sphi 0, %s199
      %s201 = sphi 0, %s199
      %s202 = sphi 0, %s201
      %s216 = sphi 0, %s202
      %s220 = sphi 0, %s220
      %s222 = sphi 0, %s220
      %s223 = sphi 0, %s222
      %s237 = sphi 0, %s223
      %s241 = sphi 0, %s241
      %s243 = sphi 0, %s241
      %s244 = sphi 0, %s243
      %s258 = sphi 0, %s244
      %s266 = sphi 0, %s268
      %s269 = sphi 0, %s266
      %s270 = sphi 0, %s269
      %s286 = sphi 0, %s270
    $region4: #{tpu_custom_call.1} parent=1 // loop_header_branch
      %32 = sbr.rel (%p30) target = $region8
    $region5: #{tpu_custom_call.1} parent=1 // loop_body
      %s34 = ssub.s32 %s29, 1
      %s35 = ssub.s32 %s29, 2
      %s42 = sadd.s32 1, %s37
      %p43 = scmp.ge.s32.totalorder %s42, 1
      %s44 = scalar_select %p43, 0, %s42
      %s45 = sadd.s32 1, %s36
      %s46 = scalar_select %p43, %s45, %s36
      %p47 = scmp.ge.s32.totalorder %s46, 2
      %s48 = scalar_select %p47, 0, %s46
      %s49 = ssub.s32 %s36, %s48
      %s50 = ssub.s32 %s37, %s44
      %s51 = sor.u32 %s49, %s50
      %p52 = scmp.eq.s32.totalorder %s51, 0
      %s54 = sadd.s32 %s53, 1
      %s55 = scalar_select %p52, %s53, %s54
      %p58 = pneg %p52
      %p59 = scmp.eq.s32.totalorder %s29, 1
      %p60 = por %p58, %p59
      %p61 = scmp.ne.s32.totalorder %s53, %s56
      %p62 = scmp.eq.s32.totalorder %s29, 0
      %p63 = por %p61, %p62
      %p64 = scmp.ne.s32.totalorder %s53, %s56
      %p65 = scmp.eq.s32.totalorder %s34, 1
      %p66 = por %p64, %p65
      %p67 = scmp.ne.s32.totalorder %s56, %s57
      %p68 = scmp.eq.s32.totalorder %s34, 0
      %p69 = por %p67, %p68
      %p70 = scmp.ne.s32.totalorder %s56, %s57
      %p71 = scmp.eq.s32.totalorder %s35, 1
      %p72 = por %p70, %p71
      %p74 = scmp.ne.s32.totalorder %s57, %s73
      %p75 = scmp.eq.s32.totalorder %s35, 0
      %p76 = por %p74, %p75
      %s77 = ssub.s32 %s36, %s48
      %p78 = scmp.eq.s32.totalorder %s77, 0
      %s80 = sadd.s32 %s79, 1
      %s81 = scalar_select %p78, %s79, %s80
      %p84 = pneg %p78
      %p85 = scmp.eq.s32.totalorder %s29, 1
      %p86 = por %p84, %p85
      %p87 = scmp.ne.s32.totalorder %s79, %s82
      %p88 = scmp.eq.s32.totalorder %s29, 0
      %p89 = por %p87, %p88
      %p90 = scmp.ne.s32.totalorder %s79, %s82
      %p91 = scmp.eq.s32.totalorder %s34, 1
      %p92 = por %p90, %p91
      %p93 = scmp.ne.s32.totalorder %s82, %s83
      %p94 = scmp.eq.s32.totalorder %s34, 0
      %p95 = por %p93, %p94
      %p96 = scmp.ne.s32.totalorder %s82, %s83
      %p97 = scmp.eq.s32.totalorder %s35, 1
      %p98 = por %p96, %p97
      %p100 = scmp.ne.s32.totalorder %s83, %s99
      %p101 = scmp.eq.s32.totalorder %s35, 0
      %p102 = por %p100, %p101
      %s103 = ssub.s32 %s36, %s48
      %p104 = scmp.eq.s32.totalorder %s103, 0
      %s106 = sadd.s32 %s105, 1
      %s107 = scalar_select %p104, %s105, %s106
      %p110 = pneg %p104
      %p111 = scmp.eq.s32.totalorder %s29, 1
      %p112 = por %p110, %p111
      %p113 = scmp.ne.s32.totalorder %s105, %s108
      %p114 = scmp.eq.s32.totalorder %s29, 0
      %p115 = por %p113, %p114
      %p116 = scmp.ne.s32.totalorder %s105, %s108
      %p117 = scmp.eq.s32.totalorder %s34, 1
      %p118 = por %p116, %p117
      %p119 = scmp.ne.s32.totalorder %s108, %s109
      %p120 = scmp.eq.s32.totalorder %s34, 0
      %p121 = por %p119, %p120
      %p122 = scmp.ne.s32.totalorder %s108, %s109
      %p123 = scmp.eq.s32.totalorder %s35, 1
      %p124 = por %p122, %p123
      %p126 = scmp.ne.s32.totalorder %s109, %s125
      %p127 = scmp.eq.s32.totalorder %s35, 0
      %p128 = por %p126, %p127
      %s129 = ssub.s32 %s36, %s48
      %s130 = ssub.s32 %s37, %s44
      %s131 = sor.u32 %s129, %s130
      %p132 = scmp.eq.s32.totalorder %s131, 0
      %s134 = sadd.s32 %s133, 1
      %s135 = scalar_select %p132, %s133, %s134
      %p138 = pneg %p132
      %p139 = scmp.eq.s32.totalorder %s29, 1
      %p140 = por %p138, %p139
      %p141 = scmp.ne.s32.totalorder %s133, %s136
      %p142 = scmp.eq.s32.totalorder %s29, 0
      %p143 = por %p141, %p142
      %p144 = scmp.ne.s32.totalorder %s133, %s136
      %p145 = scmp.eq.s32.totalorder %s34, 1
      %p146 = por %p144, %p145
      %p147 = scmp.ne.s32.totalorder %s136, %s137
      %p148 = scmp.eq.s32.totalorder %s34, 0
      %p149 = por %p147, %p148
      %p150 = scmp.ne.s32.totalorder %s136, %s137
      %p151 = scmp.eq.s32.totalorder %s35, 1
      %p152 = por %p150, %p151
      %p154 = scmp.ne.s32.totalorder %s137, %s153
      %p155 = scmp.eq.s32.totalorder %s35, 0
      %p156 = por %p154, %p155
      %s158 = sadd.s32 %s157, 1
      %p161 = scmp.eq.s32.totalorder %s29, 1
      %p162 = scmp.ne.s32.totalorder %s157, %s159
      %p163 = scmp.eq.s32.totalorder %s29, 0
      %p164 = por %p162, %p163
      %p165 = scmp.ne.s32.totalorder %s157, %s159
      %p166 = scmp.eq.s32.totalorder %s34, 1
      %p167 = por %p165, %p166
      %p168 = scmp.ne.s32.totalorder %s159, %s160
      %p169 = scmp.eq.s32.totalorder %s34, 0
      %p170 = por %p168, %p169
      %p171 = scmp.ne.s32.totalorder %s159, %s160
      %p172 = scmp.eq.s32.totalorder %s35, 1
      %p173 = por %p171, %p172
      %p175 = scmp.ne.s32.totalorder %s160, %s174
      %p176 = scmp.eq.s32.totalorder %s35, 0
      %p177 = por %p175, %p176
      %s179 = sadd.s32 %s178, 1
      %p182 = scmp.eq.s32.totalorder %s29, 1
      %p183 = scmp.ne.s32.totalorder %s178, %s180
      %p184 = scmp.eq.s32.totalorder %s29, 0
      %p185 = por %p183, %p184
      %p186 = scmp.ne.s32.totalorder %s178, %s180
      %p187 = scmp.eq.s32.totalorder %s34, 1
      %p188 = por %p186, %p187
      %p189 = scmp.ne.s32.totalorder %s180, %s181
      %p190 = scmp.eq.s32.totalorder %s34, 0
      %p191 = por %p189, %p190
      %p192 = scmp.ne.s32.totalorder %s180, %s181
      %p193 = scmp.eq.s32.totalorder %s35, 1
      %p194 = por %p192, %p193
      %p196 = scmp.ne.s32.totalorder %s181, %s195
      %p197 = scmp.eq.s32.totalorder %s35, 0
      %p198 = por %p196, %p197
      %s200 = sadd.s32 %s199, 1
      %p203 = scmp.eq.s32.totalorder %s29, 1
      %p204 = scmp.ne.s32.totalorder %s199, %s201
      %p205 = scmp.eq.s32.totalorder %s29, 0
      %p206 = por %p204, %p205
      %p207 = scmp.ne.s32.totalorder %s199, %s201
      %p208 = scmp.eq.s32.totalorder %s34, 1
      %p209 = por %p207, %p208
      %p210 = scmp.ne.s32.totalorder %s201, %s202
      %p211 = scmp.eq.s32.totalorder %s34, 0
      %p212 = por %p210, %p211
      %p213 = scmp.ne.s32.totalorder %s201, %s202
      %p214 = scmp.eq.s32.totalorder %s35, 1
      %p215 = por %p213, %p214
      %p217 = scmp.ne.s32.totalorder %s202, %s216
      %p218 = scmp.eq.s32.totalorder %s35, 0
      %p219 = por %p217, %p218
      %s221 = sadd.s32 %s220, 1
      %p224 = scmp.eq.s32.totalorder %s29, 1
      %p225 = scmp.ne.s32.totalorder %s220, %s222
      %p226 = scmp.eq.s32.totalorder %s29, 0
      %p227 = por %p225, %p226
      %p228 = scmp.ne.s32.totalorder %s220, %s222
      %p229 = scmp.eq.s32.totalorder %s34, 1
      %p230 = por %p228, %p229
      %p231 = scmp.ne.s32.totalorder %s222, %s223
      %p232 = scmp.eq.s32.totalorder %s34, 0
      %p233 = por %p231, %p232
      %p234 = scmp.ne.s32.totalorder %s222, %s223
      %p235 = scmp.eq.s32.totalorder %s35, 1
      %p236 = por %p234, %p235
      %p238 = scmp.ne.s32.totalorder %s223, %s237
      %p239 = scmp.eq.s32.totalorder %s35, 0
      %p240 = por %p238, %p239
      %s242 = sadd.s32 %s241, 1
      %p245 = scmp.eq.s32.totalorder %s29, 1
      %p246 = scmp.ne.s32.totalorder %s241, %s243
      %p247 = scmp.eq.s32.totalorder %s29, 0
      %p248 = por %p246, %p247
      %p249 = scmp.ne.s32.totalorder %s241, %s243
      %p250 = scmp.eq.s32.totalorder %s34, 1
      %p251 = por %p249, %p250
      %p252 = scmp.ne.s32.totalorder %s243, %s244
      %p253 = scmp.eq.s32.totalorder %s34, 0
      %p254 = por %p252, %p253
      %p255 = scmp.ne.s32.totalorder %s243, %s244
      %p256 = scmp.eq.s32.totalorder %s35, 1
      %p257 = por %p255, %p256
      %p259 = scmp.ne.s32.totalorder %s244, %s258
      %p260 = scmp.eq.s32.totalorder %s35, 0
      %p261 = por %p259, %p260
      %s262 = ssub.s32 %s36, %s48
      %s263 = ssub.s32 %s37, %s44
      %s264 = sor.u32 %s262, %s263
      %p265 = scmp.eq.s32.totalorder %s264, 0
      %s267 = sadd.s32 %s266, 1
      %s268 = scalar_select %p265, %s266, %s267
      %p271 = pneg %p265
      %p272 = scmp.eq.s32.totalorder %s29, 1
      %p273 = por %p271, %p272
      %p274 = scmp.ne.s32.totalorder %s266, %s269
      %p275 = scmp.eq.s32.totalorder %s29, 0
      %p276 = por %p274, %p275
      %p277 = scmp.ne.s32.totalorder %s266, %s269
      %p278 = scmp.eq.s32.totalorder %s34, 1
      %p279 = por %p277, %p278
      %p280 = scmp.ne.s32.totalorder %s269, %s270
      %p281 = scmp.eq.s32.totalorder %s34, 0
      %p282 = por %p280, %p281
      %p283 = scmp.ne.s32.totalorder %s269, %s270
      %p284 = scmp.eq.s32.totalorder %s35, 1
      %p285 = por %p283, %p284
      %p287 = scmp.ne.s32.totalorder %s270, %s286
      %p288 = scmp.eq.s32.totalorder %s35, 0
      %p289 = por %p287, %p288
      %p290 = scmp.le.s32.totalorder 1, %s29
      %p291 = scmp.lt.s32.totalorder %s29, 3
      %p292 = pnand %p290, %p291
      %p293 = pneg %p292
      // Predicated region
      $region9: #{tpu_custom_call.1} parent=5 // pred_check
        _
      $region10: #{tpu_custom_call.1} parent=5 // pred_check_branch
        %295 = sbr.rel (%p292) target = $region12
      $region11: #{tpu_custom_call.1} parent=5 // pred_region
        %s296 = ssub.s32 %s29, 1
        // Predicated region
        $region13: #{tpu_custom_call.1} parent=11 // pred_check
          %p297 = pneg %p170
        $region14: #{tpu_custom_call.1} parent=11 // pred_check_branch
          %299 = sbr.rel (%p297) target = $region16
        $region15: #{tpu_custom_call.1} parent=11 // pred_region
          %s301 = ssub.s32 256, 256
          %302 = vsyncadd [#allocation11], %s301
          %s303 = sshll.u32 [#allocation12], 4
          %s304 = int_to_ptr.vmem [resolvable:$true] %s303
          %309 = dma.hbm_to_vmem [thread:$0]  %s4, 256, %s304, [#allocation11], 64, 64, 4
        $region16: #{tpu_custom_call.1} parent=11 // pred_fallthru
          _
        // Predicated region
        $region17: #{tpu_custom_call.1} parent=11 // pred_check
          %p310 = pneg %p191
        $region18: #{tpu_custom_call.1} parent=11 // pred_check_branch
          %312 = sbr.rel (%p310) target = $region20
        $region19: #{tpu_custom_call.1} parent=11 // pred_region
          %s314 = ssub.s32 256, 256
          %315 = vsyncadd [#allocation14], %s314
          %s316 = sshll.u32 [#allocation13], 4
          %s317 = int_to_ptr.vmem [resolvable:$true] %s316
          %322 = dma.hbm_to_vmem [thread:$0]  %s5, 256, %s317, [#allocation14], 64, 64, 4
        $region20: #{tpu_custom_call.1} parent=11 // pred_fallthru
          _
        // Predicated region
        $region21: #{tpu_custom_call.1} parent=11 // pred_check
          %p323 = pneg %p212
        $region22: #{tpu_custom_call.1} parent=11 // pred_check_branch
          %325 = sbr.rel (%p323) target = $region24
        $region23: #{tpu_custom_call.1} parent=11 // pred_region
          %s327 = ssub.s32 256, 256
          %328 = vsyncadd [#allocation14], %s327
          %s329 = sshll.u32 [#allocation15], 4
          %s330 = int_to_ptr.vmem [resolvable:$true] %s329
          %335 = dma.hbm_to_vmem [thread:$0]  %s6, 256, %s330, [#allocation14], 64, 64, 4
        $region24: #{tpu_custom_call.1} parent=11 // pred_fallthru
          _
        // Predicated region
        $region25: #{tpu_custom_call.1} parent=11 // pred_check
          %p336 = pneg %p233
        $region26: #{tpu_custom_call.1} parent=11 // pred_check_branch
          %338 = sbr.rel (%p336) target = $region28
        $region27: #{tpu_custom_call.1} parent=11 // pred_region
          %s340 = ssub.s32 256, 256
          %341 = vsyncadd [#allocation17], %s340
          %s342 = sshll.u32 [#allocation16], 4
          %s343 = int_to_ptr.vmem [resolvable:$true] %s342
          %348 = dma.hbm_to_vmem [thread:$0]  %s7, 256, %s343, [#allocation17], 64, 64, 4
        $region28: #{tpu_custom_call.1} parent=11 // pred_fallthru
          _
        // Predicated region
        $region29: #{tpu_custom_call.1} parent=11 // pred_check
          %p349 = pneg %p254
        $region30: #{tpu_custom_call.1} parent=11 // pred_check_branch
          %351 = sbr.rel (%p349) target = $region32
        $region31: #{tpu_custom_call.1} parent=11 // pred_region
          %s353 = ssub.s32 16, 16
          %354 = vsyncadd [#allocation17], %s353
          %s356 = sshll.u32 [#allocation18], 4
          %s357 = int_to_ptr.vmem [resolvable:$true] %s356
          %359 = dma.hbm_to_vmem [thread:$0]  %s8, 16, %s357, [#allocation17]
        $region32: #{tpu_custom_call.1} parent=11 // pred_fallthru
          _
      $region12: #{tpu_custom_call.1} parent=5 // pred_fallthru
        _
      %p360 = scmp.lt.s32.totalorder %s29, 2
      // Predicated region
      $region33: #{tpu_custom_call.1} parent=5 // pred_check
        %p361 = pneg %p360
      $region34: #{tpu_custom_call.1} parent=5 // pred_check_branch
        %363 = sbr.rel (%p361) target = $region36
      $region35: #{tpu_custom_call.1} parent=5 // pred_region
        // Predicated region
        $region37: #{tpu_custom_call.1} parent=35 // pred_check
          %p364 = pneg %p63
        $region38: #{tpu_custom_call.1} parent=35 // pred_check_branch
          %366 = sbr.rel (%p364) target = $region40
        $region39: #{tpu_custom_call.1} parent=35 // pred_region
          %s367 = sand.u32 %s53, 1
          %s368 = scalar_lea.sflag [#allocation5], %s367
          %s369 = sand.u32 %s53, 1
          %s370 = smul.addr %s369, 8
          %s371 = scalar_lea.vmem [#allocation4], %s370
          %s373 = ssub.s32 128, 128
          %374 = vsyncadd %s368, %s373
          %s375 = sadd.s32 %s37, %s36
          %s376 = smul.addr %s375, 128
          %s377 = scalar_lea.hbm %s0, %s376
          %s379 = sshll.u32 %s371, 4
          %s380 = int_to_ptr.vmem [resolvable:$true] %s379
          %382 = dma.hbm_to_vmem [thread:$0]  %s377, 128, %s380, %s368
        $region40: #{tpu_custom_call.1} parent=35 // pred_fallthru
          _
        // Predicated region
        $region41: #{tpu_custom_call.1} parent=35 // pred_check
          %p383 = pneg %p89
        $region42: #{tpu_custom_call.1} parent=35 // pred_check_branch
          %385 = sbr.rel (%p383) target = $region44
        $region43: #{tpu_custom_call.1} parent=35 // pred_region
          %s386 = sand.u32 %s29, 1
          %s387 = scalar_lea.sflag [#allocation8], %s386
          %s388 = sand.u32 %s79, 1
          %s389 = smul.addr %s388, 8
          %s390 = scalar_lea.vmem [#allocation7], %s389
          %s392 = ssub.s32 128, 128
          %393 = vsyncadd %s387, %s392
          %s394 = smul.addr %s36, 128
          %s395 = scalar_lea.hbm %s1, %s394
          %s397 = sshll.u32 %s390, 4
          %s398 = int_to_ptr.vmem [resolvable:$true] %s397
          %400 = dma.hbm_to_vmem [thread:$0]  %s395, 128, %s398, %s387
        $region44: #{tpu_custom_call.1} parent=35 // pred_fallthru
          _
        // Predicated region
        $region45: #{tpu_custom_call.1} parent=35 // pred_check
          %p401 = pneg %p115
        $region46: #{tpu_custom_call.1} parent=35 // pred_check_branch
          %403 = sbr.rel (%p401) target = $region48
        $region47: #{tpu_custom_call.1} parent=35 // pred_region
          %s404 = sand.u32 %s29, 1
          %s405 = scalar_lea.sflag [#allocation8], %s404
          %s406 = sand.u32 %s105, 1
          %s407 = smul.addr %s406, 8
          %s408 = scalar_lea.vmem [#allocation9], %s407
          %s410 = ssub.s32 128, 128
          %411 = vsyncadd %s405, %s410
          %s412 = smul.addr %s36, 128
          %s413 = scalar_lea.hbm %s2, %s412
          %s415 = sshll.u32 %s408, 4
          %s416 = int_to_ptr.vmem [resolvable:$true] %s415
          %418 = dma.hbm_to_vmem [thread:$0]  %s413, 128, %s416, %s405
        $region48: #{tpu_custom_call.1} parent=35 // pred_fallthru
          _
        // Predicated region
        $region49: #{tpu_custom_call.1} parent=35 // pred_check
          %p419 = pneg %p143
        $region50: #{tpu_custom_call.1} parent=35 // pred_check_branch
          %421 = sbr.rel (%p419) target = $region52
        $region51: #{tpu_custom_call.1} parent=35 // pred_region
          %s422 = sand.u32 %s29, 1
          %s423 = scalar_lea.sflag [#allocation11], %s422
          %s424 = sand.u32 %s133, 1
          %s425 = smul.addr %s424, 8
          %s426 = scalar_lea.vmem [#allocation10], %s425
          %s428 = ssub.s32 128, 128
          %429 = vsyncadd %s423, %s428
          %s430 = sadd.s32 %s37, %s36
          %s431 = smul.addr %s430, 128
          %s432 = scalar_lea.hbm %s3, %s431
          %s434 = sshll.u32 %s426, 4
          %s435 = int_to_ptr.vmem [resolvable:$true] %s434
          %437 = dma.hbm_to_vmem [thread:$0]  %s432, 128, %s435, %s423
        $region52: #{tpu_custom_call.1} parent=35 // pred_fallthru
          _
      $region36: #{tpu_custom_call.1} parent=5 // pred_fallthru
        _
      %p438 = scmp.le.s32.totalorder 1, %s29
      %p439 = scmp.lt.s32.totalorder %s29, 3
      %p440 = pnand %p438, %p439
      %p441 = pneg %p440
      // Predicated region
      $region53: #{tpu_custom_call.1} parent=5 // pred_check
        _
      $region54: #{tpu_custom_call.1} parent=5 // pred_check_branch
        %443 = sbr.rel (%p440) target = $region56
      $region55: #{tpu_custom_call.1} parent=5 // pred_region
        %s444 = ssub.s32 %s29, 1
        %s445 = sand.u32 %s56, 1
        %s446 = scalar_lea.sflag [#allocation5], %s445
        %s447 = sand.u32 %s56, 1
        %s448 = smul.addr %s447, 8
        %s449 = scalar_lea.vmem [#allocation4], %s448
        // Predicated region
        $region57: #{tpu_custom_call.1} parent=55 // pred_check
          %p450 = pneg %p69
        $region58: #{tpu_custom_call.1} parent=55 // pred_check_branch
          %452 = sbr.rel (%p450) target = $region60
        $region59: #{tpu_custom_call.1} parent=55 // pred_region
          %453 = dma.done %s446, 128
        $region60: #{tpu_custom_call.1} parent=55 // pred_fallthru
          _
        %s454 = sand.u32 %s34, 1
        %s455 = scalar_lea.sflag [#allocation8], %s454
        %s456 = sand.u32 %s82, 1
        %s457 = smul.addr %s456, 8
        %s458 = scalar_lea.vmem [#allocation7], %s457
        // Predicated region
        $region61: #{tpu_custom_call.1} parent=55 // pred_check
          %p459 = pneg %p95
        $region62: #{tpu_custom_call.1} parent=55 // pred_check_branch
          %461 = sbr.rel (%p459) target = $region64
        $region63: #{tpu_custom_call.1} parent=55 // pred_region
          %462 = dma.done %s455, 128
        $region64: #{tpu_custom_call.1} parent=55 // pred_fallthru
          _
        %s463 = sand.u32 %s34, 1
        %s464 = scalar_lea.sflag [#allocation8], %s463
        %s465 = sand.u32 %s108, 1
        %s466 = smul.addr %s465, 8
        %s467 = scalar_lea.vmem [#allocation9], %s466
        // Predicated region
        $region65: #{tpu_custom_call.1} parent=55 // pred_check
          %p468 = pneg %p121
        $region66: #{tpu_custom_call.1} parent=55 // pred_check_branch
          %470 = sbr.rel (%p468) target = $region68
        $region67: #{tpu_custom_call.1} parent=55 // pred_region
          %471 = dma.done %s464, 128
        $region68: #{tpu_custom_call.1} parent=55 // pred_fallthru
          _
        %s472 = sand.u32 %s34, 1
        %s473 = scalar_lea.sflag [#allocation11], %s472
        %s474 = sand.u32 %s136, 1
        %s475 = smul.addr %s474, 8
        %s476 = scalar_lea.vmem [#allocation10], %s475
        // Predicated region
        $region69: #{tpu_custom_call.1} parent=55 // pred_check
          %p477 = pneg %p149
        $region70: #{tpu_custom_call.1} parent=55 // pred_check_branch
          %479 = sbr.rel (%p477) target = $region72
        $region71: #{tpu_custom_call.1} parent=55 // pred_region
          %480 = dma.done %s473, 128
        $region72: #{tpu_custom_call.1} parent=55 // pred_fallthru
          _
        // Predicated region
        $region73: #{tpu_custom_call.1} parent=55 // pred_check
          %p481 = pneg %p170
        $region74: #{tpu_custom_call.1} parent=55 // pred_check_branch
          %483 = sbr.rel (%p481) target = $region76
        $region75: #{tpu_custom_call.1} parent=55 // pred_region
          %484 = dma.done [#allocation11], 256
        $region76: #{tpu_custom_call.1} parent=55 // pred_fallthru
          _
        // Predicated region
        $region77: #{tpu_custom_call.1} parent=55 // pred_check
          %p485 = pneg %p191
        $region78: #{tpu_custom_call.1} parent=55 // pred_check_branch
          %487 = sbr.rel (%p485) target = $region80
        $region79: #{tpu_custom_call.1} parent=55 // pred_region
          %488 = dma.done [#allocation14], 256
        $region80: #{tpu_custom_call.1} parent=55 // pred_fallthru
          _
        // Predicated region
        $region81: #{tpu_custom_call.1} parent=55 // pred_check
          %p489 = pneg %p212
        $region82: #{tpu_custom_call.1} parent=55 // pred_check_branch
          %491 = sbr.rel (%p489) target = $region84
        $region83: #{tpu_custom_call.1} parent=55 // pred_region
          %492 = dma.done [#allocation14], 256
        $region84: #{tpu_custom_call.1} parent=55 // pred_fallthru
          _
        // Predicated region
        $region85: #{tpu_custom_call.1} parent=55 // pred_check
          %p493 = pneg %p233
        $region86: #{tpu_custom_call.1} parent=55 // pred_check_branch
          %495 = sbr.rel (%p493) target = $region88
        $region87: #{tpu_custom_call.1} parent=55 // pred_region
          %496 = dma.done [#allocation17], 256
        $region88: #{tpu_custom_call.1} parent=55 // pred_fallthru
          _
        // Predicated region
        $region89: #{tpu_custom_call.1} parent=55 // pred_check
          %p497 = pneg %p254
        $region90: #{tpu_custom_call.1} parent=55 // pred_check_branch
          %499 = sbr.rel (%p497) target = $region92
        $region91: #{tpu_custom_call.1} parent=55 // pred_region
          %500 = dma.done [#allocation17], 16
        $region92: #{tpu_custom_call.1} parent=55 // pred_fallthru
          _
        %s501 = sand.u32 %s56, 1
        %s502 = scalar_lea.sflag [#allocation5], %s501
        %s503 = sand.u32 %s56, 1
        %s504 = smul.addr %s503, 8
        %s505 = scalar_lea.vmem [#allocation4], %s504
        %p506 = pneg %p69
        %p507 = pneg %p66
        %s508 = sand.u32 %s34, 1
        %s509 = scalar_lea.sflag [#allocation8], %s508
        %s510 = sand.u32 %s82, 1
        %s511 = smul.addr %s510, 8
        %s512 = scalar_lea.vmem [#allocation7], %s511
        %p513 = pneg %p95
        %p514 = pneg %p92
        %s515 = sand.u32 %s34, 1
        %s516 = scalar_lea.sflag [#allocation8], %s515
        %s517 = sand.u32 %s108, 1
        %s518 = smul.addr %s517, 8
        %s519 = scalar_lea.vmem [#allocation9], %s518
        %p520 = pneg %p121
        %p521 = pneg %p118
        %s522 = sand.u32 %s34, 1
        %s523 = scalar_lea.sflag [#allocation11], %s522
        %s524 = sand.u32 %s136, 1
        %s525 = smul.addr %s524, 8
        %s526 = scalar_lea.vmem [#allocation10], %s525
        %p527 = pneg %p149
        %p528 = pneg %p146
        %p529 = pneg %p170
        %p530 = pneg %p167
        %p531 = pneg %p191
        %p532 = pneg %p188
        %p533 = pneg %p212
        %p534 = pneg %p209
        %p535 = pneg %p233
        %p536 = pneg %p230
        %p537 = pneg %p254
        %p538 = pneg %p251
        %p539 = pneg %p282
        %p540 = pneg %p279
        %s541 = sand.u32 %s269, 1
        %s542 = scalar_lea.sflag [#allocation6], %s541
        %s543 = sand.u32 %s269, 1
        %s544 = smul.addr %s543, 8
        %s545 = scalar_lea.vmem [#allocation19], %s544
        %p547 = scmp.eq.s32.totalorder %s39, 0
        // Predicated region
        $region93: #{tpu_custom_call.1} parent=55 // pred_check
          %p548 = pneg %p547
        $region94: #{tpu_custom_call.1} parent=55 // pred_check_branch
          %550 = sbr.rel (%p548) target = $region96
        $region95: #{tpu_custom_call.1} parent=55 // pred_region
          %v551 = vld [vmem:[%s458] sm:$0xff]
          %v552 = vpack.c.bf16 %v551, %v551
          %v553 = vld [vmem:[%s467] sm:$0xff]
          %v554 = vpack.c.bf16 %v553, %v553
          %v555 = vld [vmem:[#allocation13] sm:$0xf]
          %v556 = vld [vmem:[#allocation13 + $0x4] sm:$0xf]
          %v557 = vld [vmem:[#allocation13 + $0x8] sm:$0xf]
          %v558 = vld [vmem:[#allocation13 + $0xc] sm:$0xf]
          %v563 = vunpack.c.l.b16 %v555
          %v564 = vunpack.c.l.b16 %v556
          %v565 = vunpack.c.l.b16 %v557
          %v566 = vunpack.c.l.b16 %v558
          %v567 = vpack.c.b16 %v564, %v563
          %v568 = vpack.c.b16 %v566, %v565
          %vm571 = vcmask 261120
          %v573 = vsel %vm571, %v552, 0
          %575 = vmatprep.subr.bf16.mxu0 0
          %576 = vmatpush1.bf16.msra.mxu0 %v567
          %577 = vmatprep.subr.bf16.mxu0 0
          %578 = vmatpush1.bf16.msra.mxu0 %v568
          %579 = vmatprep.subr.bf16.mxu0 0
          %580 = vmatpush1.bf16.msra.mxu0 0
          %581 = vmatprep.subr.bf16.mxu0 0
          %582 = vmatpush1.bf16.msra.mxu0 0
          %583 = vmatprep.subr.bf16.mxu0 0
          %584 = vmatpush1.bf16.msra.mxu0 0
          %585 = vmatprep.subr.bf16.mxu0 0
          %586 = vmatpush1.bf16.msra.mxu0 0
          %587 = vmatprep.subr.bf16.mxu0 0
          %588 = vmatpush1.bf16.msra.mxu0 0
          %589 = vmatprep.subr.bf16.mxu0 0
          %590 = vmatpush1.bf16.msra.mxu0 0
          %591 = vmatprep.subr.bf16.mxu0 0
          %592 = vmatpush1.bf16.msra.mxu0 0
          %593 = vmatprep.subr.bf16.mxu0 0
          %594 = vmatpush1.bf16.msra.mxu0 0
          %595 = vmatprep.subr.bf16.mxu0 0
          %596 = vmatpush1.bf16.msra.mxu0 0
          %597 = vmatprep.subr.bf16.mxu0 0
          %598 = vmatpush1.bf16.msra.mxu0 0
          %599 = vmatprep.subr.bf16.mxu0 0
          %600 = vmatpush1.bf16.msra.mxu0 0
          %601 = vmatprep.subr.bf16.mxu0 0
          %602 = vmatpush1.bf16.msra.mxu0 0
          %603 = vmatprep.subr.bf16.mxu0 0
          %604 = vmatpush1.bf16.msra.mxu0 0
          %605 = vmatprep.subr.bf16.mxu0 0
          %606 = vmatpush1.bf16.msra.mxu0 0
          %607 = vmatprep.mubr.bf16.mxu0 0
          %608 = vmatmul.mubr.bf16.gmra.mrb[0].mxu0 %v573
          %v609 = vpop.f32.mrb[0].mxu0
          %v610 = vadd.f32 0.0, %v609
          %v611 = vpop.f32.mrb[0].mxu0
          %v612 = vpop.f32.mrb[0].mxu0
          %v613 = vpop.f32.mrb[0].mxu0
          %614 = vdwg.mxu0
          %v615 = vpack.c.bf16 %v610, %v610
          %vm616 = vcmask 257024
          %617 = vst.msk [vmem:[#allocation2] sm:$0xf] %vm616, %v615
          %v618 = vld [vmem:[#allocation15] sm:$0xf]
          %v619 = vld [vmem:[#allocation15 + $0x4] sm:$0xf]
          %v620 = vld [vmem:[#allocation15 + $0x8] sm:$0xf]
          %v621 = vld [vmem:[#allocation15 + $0xc] sm:$0xf]
          %v626 = vunpack.c.l.b16 %v618
          %v627 = vunpack.c.l.b16 %v619
          %v628 = vunpack.c.l.b16 %v620
          %v629 = vunpack.c.l.b16 %v621
          %v630 = vpack.c.b16 %v627, %v626
          %v631 = vpack.c.b16 %v629, %v628
          %v635 = vsel %vm571, %v554, 0
          %637 = vmatprep.subr.bf16.mxu0 0
          %638 = vmatpush1.bf16.msra.mxu0 %v630
          %639 = vmatprep.subr.bf16.mxu0 0
          %640 = vmatpush1.bf16.msra.mxu0 %v631
          %641 = vmatprep.subr.bf16.mxu0 0
          %642 = vmatpush1.bf16.msra.mxu0 0
          %643 = vmatprep.subr.bf16.mxu0 0
          %644 = vmatpush1.bf16.msra.mxu0 0
          %645 = vmatprep.subr.bf16.mxu0 0
          %646 = vmatpush1.bf16.msra.mxu0 0
          %647 = vmatprep.subr.bf16.mxu0 0
          %648 = vmatpush1.bf16.msra.mxu0 0
          %649 = vmatprep.subr.bf16.mxu0 0
          %650 = vmatpush1.bf16.msra.mxu0 0
          %651 = vmatprep.subr.bf16.mxu0 0
          %652 = vmatpush1.bf16.msra.mxu0 0
          %653 = vmatprep.subr.bf16.mxu0 0
          %654 = vmatpush1.bf16.msra.mxu0 0
          %655 = vmatprep.subr.bf16.mxu0 0
          %656 = vmatpush1.bf16.msra.mxu0 0
          %657 = vmatprep.subr.bf16.mxu0 0
          %658 = vmatpush1.bf16.msra.mxu0 0
          %659 = vmatprep.subr.bf16.mxu0 0
          %660 = vmatpush1.bf16.msra.mxu0 0
          %661 = vmatprep.subr.bf16.mxu0 0
          %662 = vmatpush1.bf16.msra.mxu0 0
          %663 = vmatprep.subr.bf16.mxu0 0
          %664 = vmatpush1.bf16.msra.mxu0 0
          %665 = vmatprep.subr.bf16.mxu0 0
          %666 = vmatpush1.bf16.msra.mxu0 0
          %667 = vmatprep.subr.bf16.mxu0 0
          %668 = vmatpush1.bf16.msra.mxu0 0
          %669 = vmatprep.mubr.bf16.mxu0 0
          %670 = vmatmul.mubr.bf16.gmra.mrb[0].mxu0 %v635
          %v671 = vpop.f32.mrb[0].mxu0
          %v672 = vadd.f32 0.0, %v671
          %v673 = vpop.f32.mrb[0].mxu0
          %v674 = vpop.f32.mrb[0].mxu0
          %v675 = vpop.f32.mrb[0].mxu0
          %676 = vdwg.mxu0
          %v677 = vpack.c.bf16 %v672, %v672
          %678 = vst.msk [vmem:[#allocation3] sm:$0xf] %vm616, %v677
        $region96: #{tpu_custom_call.1} parent=55 // pred_fallthru
          _
        %v679 = vld [vmem:[%s449] sm:$0xff]
        %v680 = vpack.c.bf16 %v679, %v679
        %v681 = vld [vmem:[#allocation12] sm:$0xf]
        %v682 = vld [vmem:[#allocation12 + $0x4] sm:$0xf]
        %v683 = vld [vmem:[#allocation12 + $0x8] sm:$0xf]
        %v684 = vld [vmem:[#allocation12 + $0xc] sm:$0xf]
        %v689 = vunpack.c.l.b16 %v681
        %v690 = vunpack.c.l.b16 %v682
        %v691 = vunpack.c.l.b16 %v683
        %v692 = vunpack.c.l.b16 %v684
        %v693 = vpack.c.b16 %v690, %v689
        %v694 = vpack.c.b16 %v692, %v691
        %vm697 = vcmask 261120
        %v699 = vsel %vm697, %v680, 0
        %701 = vmatprep.subr.bf16.mxu0 0
        %702 = vmatpush1.bf16.msra.mxu0 %v693
        %703 = vmatprep.subr.bf16.mxu0 0
        %704 = vmatpush1.bf16.msra.mxu0 %v694
        %705 = vmatprep.subr.bf16.mxu0 0
        %706 = vmatpush1.bf16.msra.mxu0 0
        %707 = vmatprep.subr.bf16.mxu0 0
        %708 = vmatpush1.bf16.msra.mxu0 0
        %709 = vmatprep.subr.bf16.mxu0 0
        %710 = vmatpush1.bf16.msra.mxu0 0
        %711 = vmatprep.subr.bf16.mxu0 0
        %712 = vmatpush1.bf16.msra.mxu0 0
        %713 = vmatprep.subr.bf16.mxu0 0
        %714 = vmatpush1.bf16.msra.mxu0 0
        %715 = vmatprep.subr.bf16.mxu0 0
        %716 = vmatpush1.bf16.msra.mxu0 0
        %717 = vmatprep.subr.bf16.mxu0 0
        %718 = vmatpush1.bf16.msra.mxu0 0
        %719 = vmatprep.subr.bf16.mxu0 0
        %720 = vmatpush1.bf16.msra.mxu0 0
        %721 = vmatprep.subr.bf16.mxu0 0
        %722 = vmatpush1.bf16.msra.mxu0 0
        %723 = vmatprep.subr.bf16.mxu0 0
        %724 = vmatpush1.bf16.msra.mxu0 0
        %725 = vmatprep.subr.bf16.mxu0 0
        %726 = vmatpush1.bf16.msra.mxu0 0
        %727 = vmatprep.subr.bf16.mxu0 0
        %728 = vmatpush1.bf16.msra.mxu0 0
        %729 = vmatprep.subr.bf16.mxu0 0
        %730 = vmatpush1.bf16.msra.mxu0 0
        %731 = vmatprep.subr.bf16.mxu0 0
        %732 = vmatpush1.bf16.msra.mxu0 0
        %733 = vmatprep.mubr.bf16.mxu0 0
        %734 = vmatmul.mubr.bf16.gmra.mrb[0].mxu0 %v699
        %v735 = vpop.f32.mrb[0].mxu0
        %v736 = vadd.f32 0.0, %v735
        %v737 = vpop.f32.mrb[0].mxu0
        %v738 = vpop.f32.mrb[0].mxu0
        %v739 = vpop.f32.mrb[0].mxu0
        %740 = vdwg.mxu0
        %v741 = vmul.f32 %v736, 0.17677669
        %v742 = vpack.c.bf16 %v741, %v741
        %744 = vrot.lane.b32.xlu0 %v742, 120
        %v745 = vpop.permute.xlu0 %744
        %746 = vrot.lane.b32.xlu0 %v742, 112
        %v747 = vpop.permute.xlu0 %746
        %748 = vrot.lane.b32.xlu0 %v742, 104
        %v749 = vpop.permute.xlu0 %748
        %v751 = vunpack.c.l.s4 1983009808
        %v752 = vunpack.c.0.s8 %v751
        %v753 = vlaneseq
        %v754 = vshrl.u32 %v753, 7
        %v755 = vsub.s32 %v752, %v754
        %v756 = vrot.slane %v742, %v755
        %v759 = vunpack.c.l.s4 1983009808
        %v760 = vunpack.c.0.s8 %v759
        %v761 = vlaneseq
        %v762 = vshrl.u32 %v761, 7
        %v763 = vsub.s32 %v760, %v762
        %v764 = vrot.slane %v747, %v763
        %v765 = vcombine.low %v756, %v764
        %v766 = vcombine.high %v756, %v764
        %v768 = vunpack.c.l.s4 1934713408
        %v769 = vunpack.c.0.s8 %v768
        %v770 = vlaneseq
        %v771 = vshrl.u32 %v770, 7
        %v772 = vsub.s32 %v769, %v771
        %v773 = vrot.slane %v765, %v772
        %v775 = vunpack.c.l.s4 1934713408
        %v776 = vunpack.c.0.s8 %v775
        %v777 = vlaneseq
        %v778 = vshrl.u32 %v777, 7
        %v779 = vsub.s32 %v776, %v778
        %v780 = vrot.slane %v766, %v779
        %v781 = vcombine.high %v773, 0
        %v782 = vcombine.high %v780, 0
        %v785 = vunpack.c.l.s4 1983009808
        %v786 = vunpack.c.0.s8 %v785
        %v787 = vlaneseq
        %v788 = vshrl.u32 %v787, 7
        %v789 = vsub.s32 %v786, %v788
        %v790 = vrot.slane %v745, %v789
        %v793 = vunpack.c.l.s4 1983009808
        %v794 = vunpack.c.0.s8 %v793
        %v795 = vlaneseq
        %v796 = vshrl.u32 %v795, 7
        %v797 = vsub.s32 %v794, %v796
        %v798 = vrot.slane %v749, %v797
        %v799 = vcombine.low %v790, %v798
        %v800 = vcombine.high %v790, %v798
        %v802 = vunpack.c.l.s4 1934713408
        %v803 = vunpack.c.0.s8 %v802
        %v804 = vlaneseq
        %v805 = vshrl.u32 %v804, 7
        %v806 = vsub.s32 %v803, %v805
        %v807 = vrot.slane %v799, %v806
        %v809 = vunpack.c.l.s4 1934713408
        %v810 = vunpack.c.0.s8 %v809
        %v811 = vlaneseq
        %v812 = vshrl.u32 %v811, 7
        %v813 = vsub.s32 %v810, %v812
        %v814 = vrot.slane %v800, %v813
        %v815 = vcombine.high %v807, 0
        %v816 = vcombine.high %v814, 0
        %v819 = vpack.i.b16 %v807, %v773
        %v821 = vshrl.u32 %v773, 16
        %v822 = vshrl.u32 %v807, 16
        %v823 = vpack.i.b16 %v822, %v821
        %v827 = vpack.i.b16 %v815, %v781
        %v829 = vshrl.u32 %v781, 16
        %v830 = vshrl.u32 %v815, 16
        %v831 = vpack.i.b16 %v830, %v829
        %v835 = vpack.i.b16 %v814, %v780
        %v837 = vshrl.u32 %v780, 16
        %v838 = vshrl.u32 %v814, 16
        %v839 = vpack.i.b16 %v838, %v837
        %v843 = vpack.i.b16 %v816, %v782
        %v845 = vshrl.u32 %v782, 16
        %v846 = vshrl.u32 %v816, 16
        %v847 = vpack.i.b16 %v846, %v845
        %v849 = vcombine.low %v819, %v835
        %v851 = vunpack.c.l.s4 1983009808
        %v852 = vunpack.c.0.s8 %v851
        %v853 = vlaneseq
        %v854 = vshrl.u32 %v853, 7
        %v855 = vsub.s32 %v852, %v854
        %v856 = vrot.slane %v849, %v855
        %v857 = vcombine.low %v827, %v843
        %v859 = vunpack.c.l.s4 1983009808
        %v860 = vunpack.c.0.s8 %v859
        %v861 = vlaneseq
        %v862 = vshrl.u32 %v861, 7
        %v863 = vsub.s32 %v860, %v862
        %v864 = vrot.slane %v857, %v863
        %v865 = vcombine.low %v856, %v864
        %v867 = vunpack.c.l.s4 1934713408
        %v868 = vunpack.c.0.s8 %v867
        %v869 = vlaneseq
        %v870 = vshrl.u32 %v869, 7
        %v871 = vsub.s32 %v868, %v870
        %v872 = vrot.slane %v865, %v871
        %v873 = vcombine.high %v872, 0
        %v874 = vcombine.low %v823, %v839
        %v876 = vunpack.c.l.s4 1983009808
        %v877 = vunpack.c.0.s8 %v876
        %v878 = vlaneseq
        %v879 = vshrl.u32 %v878, 7
        %v880 = vsub.s32 %v877, %v879
        %v881 = vrot.slane %v874, %v880
        %v882 = vcombine.low %v831, %v847
        %v884 = vunpack.c.l.s4 1983009808
        %v885 = vunpack.c.0.s8 %v884
        %v886 = vlaneseq
        %v887 = vshrl.u32 %v886, 7
        %v888 = vsub.s32 %v885, %v887
        %v889 = vrot.slane %v882, %v888
        %v890 = vcombine.low %v881, %v889
        %v892 = vunpack.c.l.s4 1934713408
        %v893 = vunpack.c.0.s8 %v892
        %v894 = vlaneseq
        %v895 = vshrl.u32 %v894, 7
        %v896 = vsub.s32 %v893, %v895
        %v897 = vrot.slane %v890, %v896
        %v898 = vcombine.high %v897, 0
        %v901 = vpack.i.b16 %v897, %v872
        %v902 = vshrl.u32 %v872, 16
        %v903 = vshrl.u32 %v897, 16
        %v904 = vpack.i.b16 %v903, %v902
        %v907 = vpack.i.b16 %v898, %v873
        %v908 = vshrl.u32 %v873, 16
        %v909 = vshrl.u32 %v898, 16
        %v910 = vpack.i.b16 %v909, %v908
        %v911 = vld [vmem:[#allocation2] sm:$0xf]
        %913 = vrot.lane.b32.xlu0 %v911, 120
        %v914 = vpop.permute.xlu0 %913
        %915 = vrot.lane.b32.xlu0 %v911, 112
        %v916 = vpop.permute.xlu0 %915
        %917 = vrot.lane.b32.xlu0 %v911, 104
        %v918 = vpop.permute.xlu0 %917
        %v921 = vpack.i.b16 %v914, %v911
        %v922 = vshrl.u32 %v911, 16
        %v923 = vshrl.u32 %v914, 16
        %v924 = vpack.i.b16 %v923, %v922
        %v927 = vpack.i.b16 %v918, %v916
        %v928 = vshrl.u32 %v916, 16
        %v929 = vshrl.u32 %v918, 16
        %v930 = vpack.i.b16 %v929, %v928
        %v933 = vunpack.c.l.s4 1983009808
        %v934 = vunpack.c.0.s8 %v933
        %v935 = vlaneseq
        %v936 = vshrl.u32 %v935, 7
        %v937 = vsub.s32 %v934, %v936
        %v938 = vrot.slane %v921, %v937
        %v941 = vunpack.c.l.s4 1983009808
        %v942 = vunpack.c.0.s8 %v941
        %v943 = vlaneseq
        %v944 = vshrl.u32 %v943, 7
        %v945 = vsub.s32 %v942, %v944
        %v946 = vrot.slane %v927, %v945
        %v947 = vcombine.low %v938, %v946
        %v948 = vcombine.high %v938, %v946
        %v950 = vunpack.c.l.s4 1934713408
        %v951 = vunpack.c.0.s8 %v950
        %v952 = vlaneseq
        %v953 = vshrl.u32 %v952, 7
        %v954 = vsub.s32 %v951, %v953
        %v955 = vrot.slane %v947, %v954
        %v957 = vunpack.c.l.s4 1934713408
        %v958 = vunpack.c.0.s8 %v957
        %v959 = vlaneseq
        %v960 = vshrl.u32 %v959, 7
        %v961 = vsub.s32 %v958, %v960
        %v962 = vrot.slane %v948, %v961
        %v963 = vcombine.high %v955, 0
        %v964 = vcombine.high %v962, 0
        %v967 = vunpack.c.l.s4 1983009808
        %v968 = vunpack.c.0.s8 %v967
        %v969 = vlaneseq
        %v970 = vshrl.u32 %v969, 7
        %v971 = vsub.s32 %v968, %v970
        %v972 = vrot.slane %v924, %v971
        %v975 = vunpack.c.l.s4 1983009808
        %v976 = vunpack.c.0.s8 %v975
        %v977 = vlaneseq
        %v978 = vshrl.u32 %v977, 7
        %v979 = vsub.s32 %v976, %v978
        %v980 = vrot.slane %v930, %v979
        %v981 = vcombine.low %v972, %v980
        %v982 = vcombine.high %v972, %v980
        %v984 = vunpack.c.l.s4 1934713408
        %v985 = vunpack.c.0.s8 %v984
        %v986 = vlaneseq
        %v987 = vshrl.u32 %v986, 7
        %v988 = vsub.s32 %v985, %v987
        %v989 = vrot.slane %v981, %v988
        %v991 = vunpack.c.l.s4 1934713408
        %v992 = vunpack.c.0.s8 %v991
        %v993 = vlaneseq
        %v994 = vshrl.u32 %v993, 7
        %v995 = vsub.s32 %v992, %v994
        %v996 = vrot.slane %v982, %v995
        %v997 = vcombine.high %v989, 0
        %v998 = vcombine.high %v996, 0
        %v999 = vcombine.low %v955, %v962
        %v1001 = vunpack.c.l.s4 1983009808
        %v1002 = vunpack.c.0.s8 %v1001
        %v1003 = vlaneseq
        %v1004 = vshrl.u32 %v1003, 7
        %v1005 = vsub.s32 %v1002, %v1004
        %v1006 = vrot.slane %v999, %v1005
        %v1007 = vcombine.low %v963, %v964
        %v1009 = vunpack.c.l.s4 1983009808
        %v1010 = vunpack.c.0.s8 %v1009
        %v1011 = vlaneseq
        %v1012 = vshrl.u32 %v1011, 7
        %v1013 = vsub.s32 %v1010, %v1012
        %v1014 = vrot.slane %v1007, %v1013
        %v1015 = vcombine.low %v1006, %v1014
        %v1017 = vunpack.c.l.s4 1934713408
        %v1018 = vunpack.c.0.s8 %v1017
        %v1019 = vlaneseq
        %v1020 = vshrl.u32 %v1019, 7
        %v1021 = vsub.s32 %v1018, %v1020
        %v1022 = vrot.slane %v1015, %v1021
        %v1023 = vcombine.high %v1022, 0
        %v1024 = vcombine.low %v989, %v996
        %v1026 = vunpack.c.l.s4 1983009808
        %v1027 = vunpack.c.0.s8 %v1026
        %v1028 = vlaneseq
        %v1029 = vshrl.u32 %v1028, 7
        %v1030 = vsub.s32 %v1027, %v1029
        %v1031 = vrot.slane %v1024, %v1030
        %v1032 = vcombine.low %v997, %v998
        %v1034 = vunpack.c.l.s4 1983009808
        %v1035 = vunpack.c.0.s8 %v1034
        %v1036 = vlaneseq
        %v1037 = vshrl.u32 %v1036, 7
        %v1038 = vsub.s32 %v1035, %v1037
        %v1039 = vrot.slane %v1032, %v1038
        %v1040 = vcombine.low %v1031, %v1039
        %v1042 = vunpack.c.l.s4 1934713408
        %v1043 = vunpack.c.0.s8 %v1042
        %v1044 = vlaneseq
        %v1045 = vshrl.u32 %v1044, 7
        %v1046 = vsub.s32 %v1043, %v1045
        %v1047 = vrot.slane %v1040, %v1046
        %v1048 = vcombine.high %v1047, 0
        %v1051 = vpack.i.b16 %v1047, %v1022
        %v1052 = vshrl.u32 %v1022, 16
        %v1053 = vshrl.u32 %v1047, 16
        %v1054 = vpack.i.b16 %v1053, %v1052
        %v1057 = vpack.i.b16 %v1048, %v1023
        %v1058 = vshrl.u32 %v1023, 16
        %v1059 = vshrl.u32 %v1048, 16
        %v1060 = vpack.i.b16 %v1059, %v1058
        %v1061 = vld [vmem:[#allocation3] sm:$0xf]
        %1063 = vrot.lane.b32.xlu0 %v1061, 120
        %v1064 = vpop.permute.xlu0 %1063
        %1065 = vrot.lane.b32.xlu0 %v1061, 112
        %v1066 = vpop.permute.xlu0 %1065
        %1067 = vrot.lane.b32.xlu0 %v1061, 104
        %v1068 = vpop.permute.xlu0 %1067
        %v1071 = vpack.i.b16 %v1064, %v1061
        %v1072 = vshrl.u32 %v1061, 16
        %v1073 = vshrl.u32 %v1064, 16
        %v1074 = vpack.i.b16 %v1073, %v1072
        %v1077 = vpack.i.b16 %v1068, %v1066
        %v1078 = vshrl.u32 %v1066, 16
        %v1079 = vshrl.u32 %v1068, 16
        %v1080 = vpack.i.b16 %v1079, %v1078
        %v1083 = vunpack.c.l.s4 1983009808
        %v1084 = vunpack.c.0.s8 %v1083
        %v1085 = vlaneseq
        %v1086 = vshrl.u32 %v1085, 7
        %v1087 = vsub.s32 %v1084, %v1086
        %v1088 = vrot.slane %v1071, %v1087
        %v1091 = vunpack.c.l.s4 1983009808
        %v1092 = vunpack.c.0.s8 %v1091
        %v1093 = vlaneseq
        %v1094 = vshrl.u32 %v1093, 7
        %v1095 = vsub.s32 %v1092, %v1094
        %v1096 = vrot.slane %v1077, %v1095
        %v1097 = vcombine.low %v1088, %v1096
        %v1098 = vcombine.high %v1088, %v1096
        %v1100 = vunpack.c.l.s4 1934713408
        %v1101 = vunpack.c.0.s8 %v1100
        %v1102 = vlaneseq
        %v1103 = vshrl.u32 %v1102, 7
        %v1104 = vsub.s32 %v1101, %v1103
        %v1105 = vrot.slane %v1097, %v1104
        %v1107 = vunpack.c.l.s4 1934713408
        %v1108 = vunpack.c.0.s8 %v1107
        %v1109 = vlaneseq
        %v1110 = vshrl.u32 %v1109, 7
        %v1111 = vsub.s32 %v1108, %v1110
        %v1112 = vrot.slane %v1098, %v1111
        %v1113 = vcombine.high %v1105, 0
        %v1114 = vcombine.high %v1112, 0
        %v1117 = vunpack.c.l.s4 1983009808
        %v1118 = vunpack.c.0.s8 %v1117
        %v1119 = vlaneseq
        %v1120 = vshrl.u32 %v1119, 7
        %v1121 = vsub.s32 %v1118, %v1120
        %v1122 = vrot.slane %v1074, %v1121
        %v1125 = vunpack.c.l.s4 1983009808
        %v1126 = vunpack.c.0.s8 %v1125
        %v1127 = vlaneseq
        %v1128 = vshrl.u32 %v1127, 7
        %v1129 = vsub.s32 %v1126, %v1128
        %v1130 = vrot.slane %v1080, %v1129
        %v1131 = vcombine.low %v1122, %v1130
        %v1132 = vcombine.high %v1122, %v1130
        %v1134 = vunpack.c.l.s4 1934713408
        %v1135 = vunpack.c.0.s8 %v1134
        %v1136 = vlaneseq
        %v1137 = vshrl.u32 %v1136, 7
        %v1138 = vsub.s32 %v1135, %v1137
        %v1139 = vrot.slane %v1131, %v1138
        %v1141 = vunpack.c.l.s4 1934713408
        %v1142 = vunpack.c.0.s8 %v1141
        %v1143 = vlaneseq
        %v1144 = vshrl.u32 %v1143, 7
        %v1145 = vsub.s32 %v1142, %v1144
        %v1146 = vrot.slane %v1132, %v1145
        %v1147 = vcombine.high %v1139, 0
        %v1148 = vcombine.high %v1146, 0
        %v1149 = vcombine.low %v1105, %v1112
        %v1151 = vunpack.c.l.s4 1983009808
        %v1152 = vunpack.c.0.s8 %v1151
        %v1153 = vlaneseq
        %v1154 = vshrl.u32 %v1153, 7
        %v1155 = vsub.s32 %v1152, %v1154
        %v1156 = vrot.slane %v1149, %v1155
        %v1157 = vcombine.low %v1113, %v1114
        %v1159 = vunpack.c.l.s4 1983009808
        %v1160 = vunpack.c.0.s8 %v1159
        %v1161 = vlaneseq
        %v1162 = vshrl.u32 %v1161, 7
        %v1163 = vsub.s32 %v1160, %v1162
        %v1164 = vrot.slane %v1157, %v1163
        %v1165 = vcombine.low %v1156, %v1164
        %v1167 = vunpack.c.l.s4 1934713408
        %v1168 = vunpack.c.0.s8 %v1167
        %v1169 = vlaneseq
        %v1170 = vshrl.u32 %v1169, 7
        %v1171 = vsub.s32 %v1168, %v1170
        %v1172 = vrot.slane %v1165, %v1171
        %v1173 = vcombine.high %v1172, 0
        %v1174 = vcombine.low %v1139, %v1146
        %v1176 = vunpack.c.l.s4 1983009808
        %v1177 = vunpack.c.0.s8 %v1176
        %v1178 = vlaneseq
        %v1179 = vshrl.u32 %v1178, 7
        %v1180 = vsub.s32 %v1177, %v1179
        %v1181 = vrot.slane %v1174, %v1180
        %v1182 = vcombine.low %v1147, %v1148
        %v1184 = vunpack.c.l.s4 1983009808
        %v1185 = vunpack.c.0.s8 %v1184
        %v1186 = vlaneseq
        %v1187 = vshrl.u32 %v1186, 7
        %v1188 = vsub.s32 %v1185, %v1187
        %v1189 = vrot.slane %v1182, %v1188
        %v1190 = vcombine.low %v1181, %v1189
        %v1192 = vunpack.c.l.s4 1934713408
        %v1193 = vunpack.c.0.s8 %v1192
        %v1194 = vlaneseq
        %v1195 = vshrl.u32 %v1194, 7
        %v1196 = vsub.s32 %v1193, %v1195
        %v1197 = vrot.slane %v1190, %v1196
        %v1198 = vcombine.high %v1197, 0
        %v1201 = vpack.i.b16 %v1197, %v1172
        %v1202 = vshrl.u32 %v1172, 16
        %v1203 = vshrl.u32 %v1197, 16
        %v1204 = vpack.i.b16 %v1203, %v1202
        %v1207 = vpack.i.b16 %v1198, %v1173
        %v1208 = vshrl.u32 %v1173, 16
        %v1209 = vshrl.u32 %v1198, 16
        %v1210 = vpack.i.b16 %v1209, %v1208
        %vm1211 = vcmask 64512
        %v1213 = vsel %vm1211, %v901, 0
        %v1216 = vsel %vm1211, %v1051, 0
        %1218 = vmatprep.subr.bf16.mxu0 0
        %1219 = vmatpush1.bf16.xpose.msra.mxu0 %v1216
        %1220 = vmatprep.subr.bf16.mxu0 0
        %1221 = vmatpush1.bf16.xpose.msra.mxu0 0
        %1222 = vmatprep.subr.bf16.mxu0 0
        %1223 = vmatpush1.bf16.xpose.msra.mxu0 0
        %1224 = vmatprep.subr.bf16.mxu0 0
        %1225 = vmatpush1.bf16.xpose.msra.mxu0 0
        %1226 = vmatprep.subr.bf16.mxu0 0
        %1227 = vmatpush1.bf16.xpose.msra.mxu0 0
        %1228 = vmatprep.subr.bf16.mxu0 0
        %1229 = vmatpush1.bf16.xpose.msra.mxu0 0
        %1230 = vmatprep.subr.bf16.mxu0 0
        %1231 = vmatpush1.bf16.xpose.msra.mxu0 0
        %1232 = vmatprep.subr.bf16.mxu0 0
        %1233 = vmatpush1.bf16.xpose.msra.mxu0 0
        %1234 = vmatprep.subr.bf16.mxu0 0
        %1235 = vmatpush1.bf16.xpose.msra.mxu0 0
        %1236 = vmatprep.subr.bf16.mxu0 0
        %1237 = vmatpush1.bf16.xpose.msra.mxu0 0
        %1238 = vmatprep.subr.bf16.mxu0 0
        %1239 = vmatpush1.bf16.xpose.msra.mxu0 0
        %1240 = vmatprep.subr.bf16.mxu0 0
        %1241 = vmatpush1.bf16.xpose.msra.mxu0 0
        %1242 = vmatprep.subr.bf16.mxu0 0
        %1243 = vmatpush1.bf16.xpose.msra.mxu0 0
        %1244 = vmatprep.subr.bf16.mxu0 0
        %1245 = vmatpush1.bf16.xpose.msra.mxu0 0
        %1246 = vmatprep.subr.bf16.mxu0 0
        %1247 = vmatpush1.bf16.xpose.msra.mxu0 0
        %1248 = vmatprep.subr.bf16.mxu0 0
        %1249 = vmatpush1.bf16.xpose.msra.mxu0 0
        %1250 = vmatprep.mubr.bf16.mxu0 0
        %1251 = vmatmul.mubr.bf16.gmra.mrb[0].mxu0 %v1213
        %v1252 = vpop.f32.mrb[0].mxu0
        %v1253 = vadd.f32 0.0, %v1252
        %v1254 = vpop.f32.mrb[0].mxu0
        %v1255 = vpop.f32.mrb[0].mxu0
        %v1256 = vpop.f32.mrb[0].mxu0
        %1257 = vdwg.mxu0
        %v1259 = vsel %vm1211, %v904, 0
        %v1262 = vsel %vm1211, %v1054, 0
        %1264 = vmatprep.subr.bf16.mxu0 0
        %1265 = vmatpush1.bf16.xpose.msra.mxu0 %v1262
        %1266 = vmatprep.subr.bf16.mxu0 0
        %1267 = vmatpush1.bf16.xpose.msra.mxu0 0
        %1268 = vmatprep.subr.bf16.mxu0 0
        %1269 = vmatpush1.bf16.xpose.msra.mxu0 0
        %1270 = vmatprep.subr.bf16.mxu0 0
        %1271 = vmatpush1.bf16.xpose.msra.mxu0 0
        %1272 = vmatprep.subr.bf16.mxu0 0
        %1273 = vmatpush1.bf16.xpose.msra.mxu0 0
        %1274 = vmatprep.subr.bf16.mxu0 0
        %1275 = vmatpush1.bf16.xpose.msra.mxu0 0
        %1276 = vmatprep.subr.bf16.mxu0 0
        %1277 = vmatpush1.bf16.xpose.msra.mxu0 0
        %1278 = vmatprep.subr.bf16.mxu0 0
        %1279 = vmatpush1.bf16.xpose.msra.mxu0 0
        %1280 = vmatprep.subr.bf16.mxu0 0
        %1281 = vmatpush1.bf16.xpose.msra.mxu0 0
        %1282 = vmatprep.subr.bf16.mxu0 0
        %1283 = vmatpush1.bf16.xpose.msra.mxu0 0
        %1284 = vmatprep.subr.bf16.mxu0 0
        %1285 = vmatpush1.bf16.xpose.msra.mxu0 0
        %1286 = vmatprep.subr.bf16.mxu0 0
        %1287 = vmatpush1.bf16.xpose.msra.mxu0 0
        %1288 = vmatprep.subr.bf16.mxu0 0
        %1289 = vmatpush1.bf16.xpose.msra.mxu0 0
        %1290 = vmatprep.subr.bf16.mxu0 0
        %1291 = vmatpush1.bf16.xpose.msra.mxu0 0
        %1292 = vmatprep.subr.bf16.mxu0 0
        %1293 = vmatpush1.bf16.xpose.msra.mxu0 0
        %1294 = vmatprep.subr.bf16.mxu0 0
        %1295 = vmatpush1.bf16.xpose.msra.mxu0 0
        %1296 = vmatprep.mubr.bf16.mxu0 0
        %1297 = vmatmul.mubr.bf16.gmra.mrb[0].mxu0 %v1259
        %v1298 = vpop.f32.mrb[0].mxu0
        %v1299 = vadd.f32 0.0, %v1298
        %v1300 = vpop.f32.mrb[0].mxu0
        %v1301 = vpop.f32.mrb[0].mxu0
        %v1302 = vpop.f32.mrb[0].mxu0
        %1303 = vdwg.mxu0
        %v1305 = vsel %vm1211, %v907, 0
        %v1308 = vsel %vm1211, %v1057, 0
        %1310 = vmatprep.subr.bf16.mxu0 0
        %1311 = vmatpush1.bf16.xpose.msra.mxu0 %v1308
        %1312 = vmatprep.subr.bf16.mxu0 0
        %1313 = vmatpush1.bf16.xpose.msra.mxu0 0
        %1314 = vmatprep.subr.bf16.mxu0 0
        %1315 = vmatpush1.bf16.xpose.msra.mxu0 0
        %1316 = vmatprep.subr.bf16.mxu0 0
        %1317 = vmatpush1.bf16.xpose.msra.mxu0 0
        %1318 = vmatprep.subr.bf16.mxu0 0
        %1319 = vmatpush1.bf16.xpose.msra.mxu0 0
        %1320 = vmatprep.subr.bf16.mxu0 0
        %1321 = vmatpush1.bf16.xpose.msra.mxu0 0
        %1322 = vmatprep.subr.bf16.mxu0 0
        %1323 = vmatpush1.bf16.xpose.msra.mxu0 0
        %1324 = vmatprep.subr.bf16.mxu0 0
        %1325 = vmatpush1.bf16.xpose.msra.mxu0 0
        %1326 = vmatprep.subr.bf16.mxu0 0
        %1327 = vmatpush1.bf16.xpose.msra.mxu0 0
        %1328 = vmatprep.subr.bf16.mxu0 0
        %1329 = vmatpush1.bf16.xpose.msra.mxu0 0
        %1330 = vmatprep.subr.bf16.mxu0 0
        %1331 = vmatpush1.bf16.xpose.msra.mxu0 0
        %1332 = vmatprep.subr.bf16.mxu0 0
        %1333 = vmatpush1.bf16.xpose.msra.mxu0 0
        %1334 = vmatprep.subr.bf16.mxu0 0
        %1335 = vmatpush1.bf16.xpose.msra.mxu0 0
        %1336 = vmatprep.subr.bf16.mxu0 0
        %1337 = vmatpush1.bf16.xpose.msra.mxu0 0
        %1338 = vmatprep.subr.bf16.mxu0 0
        %1339 = vmatpush1.bf16.xpose.msra.mxu0 0
        %1340 = vmatprep.subr.bf16.mxu0 0
        %1341 = vmatpush1.bf16.xpose.msra.mxu0 0
        %1342 = vmatprep.mubr.bf16.mxu0 0
        %1343 = vmatmul.mubr.bf16.gmra.mrb[0].mxu0 %v1305
        %v1344 = vpop.f32.mrb[0].mxu0
        %v1345 = vadd.f32 0.0, %v1344
        %v1346 = vpop.f32.mrb[0].mxu0
        %v1347 = vpop.f32.mrb[0].mxu0
        %v1348 = vpop.f32.mrb[0].mxu0
        %1349 = vdwg.mxu0
        %v1351 = vsel %vm1211, %v910, 0
        %v1354 = vsel %vm1211, %v1060, 0
        %1356 = vmatprep.subr.bf16.mxu0 0
        %1357 = vmatpush1.bf16.xpose.msra.mxu0 %v1354
        %1358 = vmatprep.subr.bf16.mxu0 0
        %1359 = vmatpush1.bf16.xpose.msra.mxu0 0
        %1360 = vmatprep.subr.bf16.mxu0 0
        %1361 = vmatpush1.bf16.xpose.msra.mxu0 0
        %1362 = vmatprep.subr.bf16.mxu0 0
        %1363 = vmatpush1.bf16.xpose.msra.mxu0 0
        %1364 = vmatprep.subr.bf16.mxu0 0
        %1365 = vmatpush1.bf16.xpose.msra.mxu0 0
        %1366 = vmatprep.subr.bf16.mxu0 0
        %1367 = vmatpush1.bf16.xpose.msra.mxu0 0
        %1368 = vmatprep.subr.bf16.mxu0 0
        %1369 = vmatpush1.bf16.xpose.msra.mxu0 0
        %1370 = vmatprep.subr.bf16.mxu0 0
        %1371 = vmatpush1.bf16.xpose.msra.mxu0 0
        %1372 = vmatprep.subr.bf16.mxu0 0
        %1373 = vmatpush1.bf16.xpose.msra.mxu0 0
        %1374 = vmatprep.subr.bf16.mxu0 0
        %1375 = vmatpush1.bf16.xpose.msra.mxu0 0
        %1376 = vmatprep.subr.bf16.mxu0 0
        %1377 = vmatpush1.bf16.xpose.msra.mxu0 0
        %1378 = vmatprep.subr.bf16.mxu0 0
        %1379 = vmatpush1.bf16.xpose.msra.mxu0 0
        %1380 = vmatprep.subr.bf16.mxu0 0
        %1381 = vmatpush1.bf16.xpose.msra.mxu0 0
        %1382 = vmatprep.subr.bf16.mxu0 0
        %1383 = vmatpush1.bf16.xpose.msra.mxu0 0
        %1384 = vmatprep.subr.bf16.mxu0 0
        %1385 = vmatpush1.bf16.xpose.msra.mxu0 0
        %1386 = vmatprep.subr.bf16.mxu0 0
        %1387 = vmatpush1.bf16.xpose.msra.mxu0 0
        %1388 = vmatprep.mubr.bf16.mxu0 0
        %1389 = vmatmul.mubr.bf16.gmra.mrb[0].mxu0 %v1351
        %v1390 = vpop.f32.mrb[0].mxu0
        %v1391 = vadd.f32 0.0, %v1390
        %v1392 = vpop.f32.mrb[0].mxu0
        %v1393 = vpop.f32.mrb[0].mxu0
        %v1394 = vpop.f32.mrb[0].mxu0
        %1395 = vdwg.mxu0
        %v1396 = vld [vmem:[%s476] sm:$0xff]
        %vm1397 = vcmp.eq.s32.totalorder %v1396, 0
        %v1398 = vsel %vm1397, 1, 0
        %vm1399 = vcmp.eq.s32.totalorder %v1398, 1
        %v1400 = vsel %vm1399, -1e+20, %v1253
        %v1401 = vsel %vm1399, -1e+20, %v1299
        %v1402 = vsel %vm1399, -1e+20, %v1345
        %v1403 = vsel %vm1399, -1e+20, %v1391
        %v1404 = vsel %vm1211, %v1400, -inf
        %1405 = vmax.xlane.f32.xlu0 %v1404
        %v1406 = vpop.xlane.xlu0 %1405
        %v1407 = vsel %vm1211, %v1401, -inf
        %1408 = vmax.xlane.f32.xlu0 %v1407
        %v1409 = vpop.xlane.xlu0 %1408
        %v1410 = vsel %vm1211, %v1402, -inf
        %1411 = vmax.xlane.f32.xlu0 %v1410
        %v1412 = vpop.xlane.xlu0 %1411
        %v1413 = vsel %vm1211, %v1403, -inf
        %1414 = vmax.xlane.f32.xlu0 %v1413
        %v1415 = vpop.xlane.xlu0 %1414
        %v1416 = vsub.f32 %v1400, %v1406
        %v1417 = vsub.f32 %v1401, %v1409
        %v1418 = vsub.f32 %v1402, %v1412
        %v1419 = vsub.f32 %v1403, %v1415
        %v1420 = vmul.f32 %v1416, 1.442695
        %v1421 = vpow.pop %v1420
        %v1422 = vmul.f32 %v1417, 1.442695
        %v1423 = vpow.pop %v1422
        %v1424 = vmul.f32 %v1418, 1.442695
        %v1425 = vpow.pop %v1424
        %v1426 = vmul.f32 %v1419, 1.442695
        %v1427 = vpow.pop %v1426
        %v1428 = vsel %vm1211, %v1421, 0.0
        %1429 = vadd.xlane.f32.xlu0 %v1428
        %v1430 = vpop.xlane.xlu0 %1429
        %v1431 = vsel %vm1211, %v1423, 0.0
        %1432 = vadd.xlane.f32.xlu0 %v1431
        %v1433 = vpop.xlane.xlu0 %1432
        %v1434 = vsel %vm1211, %v1425, 0.0
        %1435 = vadd.xlane.f32.xlu0 %v1434
        %v1436 = vpop.xlane.xlu0 %1435
        %v1437 = vsel %vm1211, %v1427, 0.0
        %1438 = vadd.xlane.f32.xlu0 %v1437
        %v1439 = vpop.xlane.xlu0 %1438
        %v1440 = vrcp.pop %v1430
        %v1441 = vrcp.pop %v1433
        %v1442 = vrcp.pop %v1436
        %v1443 = vrcp.pop %v1439
        %v1444 = vmul.f32 %v1430, %v1440
        %v1445 = vmul.f32 %v1433, %v1441
        %v1446 = vmul.f32 %v1436, %v1442
        %v1447 = vmul.f32 %v1439, %v1443
        %v1448 = vsub.f32 2.0, %v1444
        %v1449 = vsub.f32 2.0, %v1445
        %v1450 = vsub.f32 2.0, %v1446
        %v1451 = vsub.f32 2.0, %v1447
        %v1452 = vmul.f32 %v1440, %v1448
        %v1453 = vmul.f32 %v1441, %v1449
        %v1454 = vmul.f32 %v1442, %v1450
        %v1455 = vmul.f32 %v1443, %v1451
        %v1456 = vmul.f32 %v1421, %v1452
        %v1457 = vmul.f32 %v1423, %v1453
        %v1458 = vmul.f32 %v1425, %v1454
        %v1459 = vmul.f32 %v1427, %v1455
        %v1460 = vpack.c.bf16 %v1456, %v1456
        %v1461 = vpack.c.bf16 %v1457, %v1457
        %v1462 = vpack.c.bf16 %v1458, %v1458
        %v1463 = vpack.c.bf16 %v1459, %v1459
        %v1465 = vsel %vm1211, %v1460, 0
        %vm1467 = vcmask 1043456
        %v1469 = vsel %vm1467, %v1201, 0
        %1471 = vmatprep.subr.bf16.mxu0 0
        %1472 = vmatpush1.bf16.msra.mxu0 %v1469
        %1473 = vmatprep.subr.bf16.mxu0 0
        %1474 = vmatpush1.bf16.msra.mxu0 0
        %1475 = vmatprep.subr.bf16.mxu0 0
        %1476 = vmatpush1.bf16.msra.mxu0 0
        %1477 = vmatprep.subr.bf16.mxu0 0
        %1478 = vmatpush1.bf16.msra.mxu0 0
        %1479 = vmatprep.subr.bf16.mxu0 0
        %1480 = vmatpush1.bf16.msra.mxu0 0
        %1481 = vmatprep.subr.bf16.mxu0 0
        %1482 = vmatpush1.bf16.msra.mxu0 0
        %1483 = vmatprep.subr.bf16.mxu0 0
        %1484 = vmatpush1.bf16.msra.mxu0 0
        %1485 = vmatprep.subr.bf16.mxu0 0
        %1486 = vmatpush1.bf16.msra.mxu0 0
        %1487 = vmatprep.subr.bf16.mxu0 0
        %1488 = vmatpush1.bf16.msra.mxu0 0
        %1489 = vmatprep.subr.bf16.mxu0 0
        %1490 = vmatpush1.bf16.msra.mxu0 0
        %1491 = vmatprep.subr.bf16.mxu0 0
        %1492 = vmatpush1.bf16.msra.mxu0 0
        %1493 = vmatprep.subr.bf16.mxu0 0
        %1494 = vmatpush1.bf16.msra.mxu0 0
        %1495 = vmatprep.subr.bf16.mxu0 0
        %1496 = vmatpush1.bf16.msra.mxu0 0
        %1497 = vmatprep.subr.bf16.mxu0 0
        %1498 = vmatpush1.bf16.msra.mxu0 0
        %1499 = vmatprep.subr.bf16.mxu0 0
        %1500 = vmatpush1.bf16.msra.mxu0 0
        %1501 = vmatprep.subr.bf16.mxu0 0
        %1502 = vmatpush1.bf16.msra.mxu0 0
        %1503 = vmatprep.mubr.bf16.mxu0 0
        %1504 = vmatmul.mubr.bf16.gmra.mrb[0].mxu0 %v1465
        %v1505 = vpop.f32.mrb[0].mxu0
        %v1506 = vadd.f32 0.0, %v1505
        %v1507 = vpop.f32.mrb[0].mxu0
        %v1508 = vpop.f32.mrb[0].mxu0
        %v1509 = vpop.f32.mrb[0].mxu0
        %1510 = vdwg.mxu0
        %v1512 = vsel %vm1211, %v1461, 0
        %v1515 = vsel %vm1467, %v1204, 0
        %1517 = vmatprep.subr.bf16.mxu0 0
        %1518 = vmatpush1.bf16.msra.mxu0 %v1515
        %1519 = vmatprep.subr.bf16.mxu0 0
        %1520 = vmatpush1.bf16.msra.mxu0 0
        %1521 = vmatprep.subr.bf16.mxu0 0
        %1522 = vmatpush1.bf16.msra.mxu0 0
        %1523 = vmatprep.subr.bf16.mxu0 0
        %1524 = vmatpush1.bf16.msra.mxu0 0
        %1525 = vmatprep.subr.bf16.mxu0 0
        %1526 = vmatpush1.bf16.msra.mxu0 0
        %1527 = vmatprep.subr.bf16.mxu0 0
        %1528 = vmatpush1.bf16.msra.mxu0 0
        %1529 = vmatprep.subr.bf16.mxu0 0
        %1530 = vmatpush1.bf16.msra.mxu0 0
        %1531 = vmatprep.subr.bf16.mxu0 0
        %1532 = vmatpush1.bf16.msra.mxu0 0
        %1533 = vmatprep.subr.bf16.mxu0 0
        %1534 = vmatpush1.bf16.msra.mxu0 0
        %1535 = vmatprep.subr.bf16.mxu0 0
        %1536 = vmatpush1.bf16.msra.mxu0 0
        %1537 = vmatprep.subr.bf16.mxu0 0
        %1538 = vmatpush1.bf16.msra.mxu0 0
        %1539 = vmatprep.subr.bf16.mxu0 0
        %1540 = vmatpush1.bf16.msra.mxu0 0
        %1541 = vmatprep.subr.bf16.mxu0 0
        %1542 = vmatpush1.bf16.msra.mxu0 0
        %1543 = vmatprep.subr.bf16.mxu0 0
        %1544 = vmatpush1.bf16.msra.mxu0 0
        %1545 = vmatprep.subr.bf16.mxu0 0
        %1546 = vmatpush1.bf16.msra.mxu0 0
        %1547 = vmatprep.subr.bf16.mxu0 0
        %1548 = vmatpush1.bf16.msra.mxu0 0
        %1549 = vmatprep.mubr.bf16.mxu0 0
        %1550 = vmatmul.mubr.bf16.gmra.mrb[0].mxu0 %v1512
        %v1551 = vpop.f32.mrb[0].mxu0
        %v1552 = vadd.f32 0.0, %v1551
        %v1553 = vpop.f32.mrb[0].mxu0
        %v1554 = vpop.f32.mrb[0].mxu0
        %v1555 = vpop.f32.mrb[0].mxu0
        %1556 = vdwg.mxu0
        %v1558 = vsel %vm1211, %v1462, 0
        %v1561 = vsel %vm1467, %v1207, 0
        %1563 = vmatprep.subr.bf16.mxu0 0
        %1564 = vmatpush1.bf16.msra.mxu0 %v1561
        %1565 = vmatprep.subr.bf16.mxu0 0
        %1566 = vmatpush1.bf16.msra.mxu0 0
        %1567 = vmatprep.subr.bf16.mxu0 0
        %1568 = vmatpush1.bf16.msra.mxu0 0
        %1569 = vmatprep.subr.bf16.mxu0 0
        %1570 = vmatpush1.bf16.msra.mxu0 0
        %1571 = vmatprep.subr.bf16.mxu0 0
        %1572 = vmatpush1.bf16.msra.mxu0 0
        %1573 = vmatprep.subr.bf16.mxu0 0
        %1574 = vmatpush1.bf16.msra.mxu0 0
        %1575 = vmatprep.subr.bf16.mxu0 0
        %1576 = vmatpush1.bf16.msra.mxu0 0
        %1577 = vmatprep.subr.bf16.mxu0 0
        %1578 = vmatpush1.bf16.msra.mxu0 0
        %1579 = vmatprep.subr.bf16.mxu0 0
        %1580 = vmatpush1.bf16.msra.mxu0 0
        %1581 = vmatprep.subr.bf16.mxu0 0
        %1582 = vmatpush1.bf16.msra.mxu0 0
        %1583 = vmatprep.subr.bf16.mxu0 0
        %1584 = vmatpush1.bf16.msra.mxu0 0
        %1585 = vmatprep.subr.bf16.mxu0 0
        %1586 = vmatpush1.bf16.msra.mxu0 0
        %1587 = vmatprep.subr.bf16.mxu0 0
        %1588 = vmatpush1.bf16.msra.mxu0 0
        %1589 = vmatprep.subr.bf16.mxu0 0
        %1590 = vmatpush1.bf16.msra.mxu0 0
        %1591 = vmatprep.subr.bf16.mxu0 0
        %1592 = vmatpush1.bf16.msra.mxu0 0
        %1593 = vmatprep.subr.bf16.mxu0 0
        %1594 = vmatpush1.bf16.msra.mxu0 0
        %1595 = vmatprep.mubr.bf16.mxu0 0
        %1596 = vmatmul.mubr.bf16.gmra.mrb[0].mxu0 %v1558
        %v1597 = vpop.f32.mrb[0].mxu0
        %v1598 = vadd.f32 0.0, %v1597
        %v1599 = vpop.f32.mrb[0].mxu0
        %v1600 = vpop.f32.mrb[0].mxu0
        %v1601 = vpop.f32.mrb[0].mxu0
        %1602 = vdwg.mxu0
        %v1604 = vsel %vm1211, %v1463, 0
        %v1607 = vsel %vm1467, %v1210, 0
        %1609 = vmatprep.subr.bf16.mxu0 0
        %1610 = vmatpush1.bf16.msra.mxu0 %v1607
        %1611 = vmatprep.subr.bf16.mxu0 0
        %1612 = vmatpush1.bf16.msra.mxu0 0
        %1613 = vmatprep.subr.bf16.mxu0 0
        %1614 = vmatpush1.bf16.msra.mxu0 0
        %1615 = vmatprep.subr.bf16.mxu0 0
        %1616 = vmatpush1.bf16.msra.mxu0 0
        %1617 = vmatprep.subr.bf16.mxu0 0
        %1618 = vmatpush1.bf16.msra.mxu0 0
        %1619 = vmatprep.subr.bf16.mxu0 0
        %1620 = vmatpush1.bf16.msra.mxu0 0
        %1621 = vmatprep.subr.bf16.mxu0 0
        %1622 = vmatpush1.bf16.msra.mxu0 0
        %1623 = vmatprep.subr.bf16.mxu0 0
        %1624 = vmatpush1.bf16.msra.mxu0 0
        %1625 = vmatprep.subr.bf16.mxu0 0
        %1626 = vmatpush1.bf16.msra.mxu0 0
        %1627 = vmatprep.subr.bf16.mxu0 0
        %1628 = vmatpush1.bf16.msra.mxu0 0
        %1629 = vmatprep.subr.bf16.mxu0 0
        %1630 = vmatpush1.bf16.msra.mxu0 0
        %1631 = vmatprep.subr.bf16.mxu0 0
        %1632 = vmatpush1.bf16.msra.mxu0 0
        %1633 = vmatprep.subr.bf16.mxu0 0
        %1634 = vmatpush1.bf16.msra.mxu0 0
        %1635 = vmatprep.subr.bf16.mxu0 0
        %1636 = vmatpush1.bf16.msra.mxu0 0
        %1637 = vmatprep.subr.bf16.mxu0 0
        %1638 = vmatpush1.bf16.msra.mxu0 0
        %1639 = vmatprep.subr.bf16.mxu0 0
        %1640 = vmatpush1.bf16.msra.mxu0 0
        %1641 = vmatprep.mubr.bf16.mxu0 0
        %1642 = vmatmul.mubr.bf16.gmra.mrb[0].mxu0 %v1604
        %v1643 = vpop.f32.mrb[0].mxu0
        %v1644 = vadd.f32 0.0, %v1643
        %v1645 = vpop.f32.mrb[0].mxu0
        %v1646 = vpop.f32.mrb[0].mxu0
        %v1647 = vpop.f32.mrb[0].mxu0
        %1648 = vdwg.mxu0
        %v1649 = vcombine.low %v1506, %v1598
        %v1650 = vcombine.high %v1506, %v1598
        %v1652 = vunpack.c.l.s4 1983009808
        %v1653 = vunpack.c.0.s8 %v1652
        %v1654 = vlaneseq
        %v1655 = vshrl.u32 %v1654, 7
        %v1656 = vsub.s32 %v1653, %v1655
        %v1657 = vrot.slane %v1649, %v1656
        %v1659 = vunpack.c.l.s4 1983009808
        %v1660 = vunpack.c.0.s8 %v1659
        %v1661 = vlaneseq
        %v1662 = vshrl.u32 %v1661, 7
        %v1663 = vsub.s32 %v1660, %v1662
        %v1664 = vrot.slane %v1650, %v1663
        %v1665 = vcombine.low %v1552, %v1644
        %v1666 = vcombine.high %v1552, %v1644
        %v1668 = vunpack.c.l.s4 1983009808
        %v1669 = vunpack.c.0.s8 %v1668
        %v1670 = vlaneseq
        %v1671 = vshrl.u32 %v1670, 7
        %v1672 = vsub.s32 %v1669, %v1671
        %v1673 = vrot.slane %v1665, %v1672
        %v1675 = vunpack.c.l.s4 1983009808
        %v1676 = vunpack.c.0.s8 %v1675
        %v1677 = vlaneseq
        %v1678 = vshrl.u32 %v1677, 7
        %v1679 = vsub.s32 %v1676, %v1678
        %v1680 = vrot.slane %v1666, %v1679
        %v1681 = vcombine.low %v1657, %v1673
        %v1682 = vcombine.high %v1657, %v1673
        %v1684 = vunpack.c.l.s4 1934713408
        %v1685 = vunpack.c.0.s8 %v1684
        %v1686 = vlaneseq
        %v1687 = vshrl.u32 %v1686, 7
        %v1688 = vsub.s32 %v1685, %v1687
        %v1689 = vrot.slane %v1681, %v1688
        %v1691 = vunpack.c.l.s4 1934713408
        %v1692 = vunpack.c.0.s8 %v1691
        %v1693 = vlaneseq
        %v1694 = vshrl.u32 %v1693, 7
        %v1695 = vsub.s32 %v1692, %v1694
        %v1696 = vrot.slane %v1682, %v1695
        %v1697 = vcombine.low %v1664, %v1680
        %v1698 = vcombine.high %v1664, %v1680
        %v1700 = vunpack.c.l.s4 1934713408
        %v1701 = vunpack.c.0.s8 %v1700
        %v1702 = vlaneseq
        %v1703 = vshrl.u32 %v1702, 7
        %v1704 = vsub.s32 %v1701, %v1703
        %v1705 = vrot.slane %v1697, %v1704
        %v1707 = vunpack.c.l.s4 1934713408
        %v1708 = vunpack.c.0.s8 %v1707
        %v1709 = vlaneseq
        %v1710 = vshrl.u32 %v1709, 7
        %v1711 = vsub.s32 %v1708, %v1710
        %v1712 = vrot.slane %v1698, %v1711
        %v1713 = vcombine.high %v1689, 0.0
        %v1714 = vcombine.high %v1696, 0.0
        %v1715 = vcombine.high %v1705, 0.0
        %v1716 = vcombine.high %v1712, 0.0
        %v1717 = vcombine.low %v1689, %v1696
        %v1719 = vunpack.c.l.s4 1983009808
        %v1720 = vunpack.c.0.s8 %v1719
        %v1721 = vlaneseq
        %v1722 = vshrl.u32 %v1721, 7
        %v1723 = vsub.s32 %v1720, %v1722
        %v1724 = vrot.slane %v1717, %v1723
        %v1725 = vcombine.low %v1713, %v1714
        %v1727 = vunpack.c.l.s4 1983009808
        %v1728 = vunpack.c.0.s8 %v1727
        %v1729 = vlaneseq
        %v1730 = vshrl.u32 %v1729, 7
        %v1731 = vsub.s32 %v1728, %v1730
        %v1732 = vrot.slane %v1725, %v1731
        %v1733 = vcombine.low %v1705, %v1712
        %v1735 = vunpack.c.l.s4 1983009808
        %v1736 = vunpack.c.0.s8 %v1735
        %v1737 = vlaneseq
        %v1738 = vshrl.u32 %v1737, 7
        %v1739 = vsub.s32 %v1736, %v1738
        %v1740 = vrot.slane %v1733, %v1739
        %v1741 = vcombine.low %v1715, %v1716
        %v1743 = vunpack.c.l.s4 1983009808
        %v1744 = vunpack.c.0.s8 %v1743
        %v1745 = vlaneseq
        %v1746 = vshrl.u32 %v1745, 7
        %v1747 = vsub.s32 %v1744, %v1746
        %v1748 = vrot.slane %v1741, %v1747
        %v1749 = vcombine.low %v1724, %v1732
        %v1750 = vcombine.high %v1724, %v1732
        %v1752 = vunpack.c.l.s4 1934713408
        %v1753 = vunpack.c.0.s8 %v1752
        %v1754 = vlaneseq
        %v1755 = vshrl.u32 %v1754, 7
        %v1756 = vsub.s32 %v1753, %v1755
        %v1757 = vrot.slane %v1749, %v1756
        %v1759 = vunpack.c.l.s4 1934713408
        %v1760 = vunpack.c.0.s8 %v1759
        %v1761 = vlaneseq
        %v1762 = vshrl.u32 %v1761, 7
        %v1763 = vsub.s32 %v1760, %v1762
        %v1764 = vrot.slane %v1750, %v1763
        %v1765 = vcombine.low %v1740, %v1748
        %v1766 = vcombine.high %v1740, %v1748
        %v1768 = vunpack.c.l.s4 1934713408
        %v1769 = vunpack.c.0.s8 %v1768
        %v1770 = vlaneseq
        %v1771 = vshrl.u32 %v1770, 7
        %v1772 = vsub.s32 %v1769, %v1771
        %v1773 = vrot.slane %v1765, %v1772
        %v1775 = vunpack.c.l.s4 1934713408
        %v1776 = vunpack.c.0.s8 %v1775
        %v1777 = vlaneseq
        %v1778 = vshrl.u32 %v1777, 7
        %v1779 = vsub.s32 %v1776, %v1778
        %v1780 = vrot.slane %v1766, %v1779
        %v1781 = vcombine.low %v1757, %v1773
        %v1782 = vcombine.high %v1757, %v1773
        %v1783 = vcombine.low %v1764, %v1780
        %v1784 = vcombine.high %v1764, %v1780
        %1786 = vrot.lane.b32.xlu0 %v1782, 8
        %v1787 = vpop.permute.xlu0 %1786
        %1790 = vrot.lane.b32.xlu0 %v1783, 16
        %v1791 = vpop.permute.xlu0 %1790
        %1794 = vrot.lane.b32.xlu0 %v1784, 24
        %v1795 = vpop.permute.xlu0 %1794
        %v1797 = vsel %vm1211, %v1781, %v1787
        %vm1798 = vcmask 130048
        %v1799 = vsel %vm1798, %v1797, %v1791
        %vm1800 = vcmask 195584
        %v1801 = vsel %vm1800, %v1799, %v1795
        %v1802 = vpack.c.bf16 %v1801, %v1801
        %v1803 = vld [vmem:[#allocation16] sm:$0xf]
        %v1804 = vld [vmem:[#allocation16 + $0x4] sm:$0xf]
        %v1805 = vld [vmem:[#allocation16 + $0x8] sm:$0xf]
        %v1806 = vld [vmem:[#allocation16 + $0xc] sm:$0xf]
        %v1807 = vld [vmem:[#allocation18] sm:$0x1]
        %v1809 = vlaneseq
        %v1810 = vshrl.u32 %v1809, 7
        %v1811 = vsub.s32 0, %v1810
        %v1812 = vrot.slane %v1807, %v1811
        %v1818 = vunpack.c.l.b16 %v1803
        %v1819 = vunpack.c.l.b16 %v1804
        %v1820 = vunpack.c.l.b16 %v1805
        %v1821 = vunpack.c.l.b16 %v1806
        %v1822 = vpack.c.b16 %v1819, %v1818
        %v1823 = vpack.c.b16 %v1821, %v1820
        %v1827 = vsel %vm697, %v1802, 0
        %1829 = vmatprep.subr.bf16.mxu0 0
        %1830 = vmatpush1.bf16.msra.mxu0 %v1822
        %1831 = vmatprep.subr.bf16.mxu0 0
        %1832 = vmatpush1.bf16.msra.mxu0 %v1823
        %1833 = vmatprep.subr.bf16.mxu0 0
        %1834 = vmatpush1.bf16.msra.mxu0 0
        %1835 = vmatprep.subr.bf16.mxu0 0
        %1836 = vmatpush1.bf16.msra.mxu0 0
        %1837 = vmatprep.subr.bf16.mxu0 0
        %1838 = vmatpush1.bf16.msra.mxu0 0
        %1839 = vmatprep.subr.bf16.mxu0 0
        %1840 = vmatpush1.bf16.msra.mxu0 0
        %1841 = vmatprep.subr.bf16.mxu0 0
        %1842 = vmatpush1.bf16.msra.mxu0 0
        %1843 = vmatprep.subr.bf16.mxu0 0
        %1844 = vmatpush1.bf16.msra.mxu0 0
        %1845 = vmatprep.subr.bf16.mxu0 0
        %1846 = vmatpush1.bf16.msra.mxu0 0
        %1847 = vmatprep.subr.bf16.mxu0 0
        %1848 = vmatpush1.bf16.msra.mxu0 0
        %1849 = vmatprep.subr.bf16.mxu0 0
        %1850 = vmatpush1.bf16.msra.mxu0 0
        %1851 = vmatprep.subr.bf16.mxu0 0
        %1852 = vmatpush1.bf16.msra.mxu0 0
        %1853 = vmatprep.subr.bf16.mxu0 0
        %1854 = vmatpush1.bf16.msra.mxu0 0
        %1855 = vmatprep.subr.bf16.mxu0 0
        %1856 = vmatpush1.bf16.msra.mxu0 0
        %1857 = vmatprep.subr.bf16.mxu0 0
        %1858 = vmatpush1.bf16.msra.mxu0 0
        %1859 = vmatprep.subr.bf16.mxu0 0
        %1860 = vmatpush1.bf16.msra.mxu0 0
        %1861 = vmatprep.mubr.bf16.mxu0 0
        %1862 = vmatmul.mubr.bf16.gmra.mrb[0].mxu0 %v1827
        %v1863 = vpop.f32.mrb[0].mxu0
        %v1864 = vadd.f32 %v1812, %v1863
        %v1865 = vpop.f32.mrb[0].mxu0
        %v1866 = vpop.f32.mrb[0].mxu0
        %v1867 = vpop.f32.mrb[0].mxu0
        %1868 = vdwg.mxu0
        %1869 = vst.msk [vmem:[%s545] sm:$0xff] %vm697, %v1864
        %s1870 = sand.u32 %s269, 1
        %s1871 = scalar_lea.sflag [#allocation6], %s1870
        %s1872 = sand.u32 %s269, 1
        %s1873 = smul.addr %s1872, 8
        %s1874 = scalar_lea.vmem [#allocation19], %s1873
        // Predicated region
        $region97: #{tpu_custom_call.1} parent=55 // pred_check
          %p1875 = pneg %p279
        $region98: #{tpu_custom_call.1} parent=55 // pred_check_branch
          %1877 = sbr.rel (%p1875) target = $region100
        $region99: #{tpu_custom_call.1} parent=55 // pred_region
          %s1879 = ssub.s32 128, 128
          %1880 = vsyncadd %s1871, %s1879
          %s1881 = sadd.s32 %s39, %s38
          %s1882 = smul.addr %s1881, 128
          %s1883 = scalar_lea.hbm %s9, %s1882
          %s1885 = sshll.u32 %s1874, 4
          %s1886 = int_to_ptr.vmem [resolvable:$true] %s1885
          %1888 = dma.vmem_to_hbm [thread:$0]  %s1886, 128, %s1883, %s1871
        $region100: #{tpu_custom_call.1} parent=55 // pred_fallthru
          _
      $region56: #{tpu_custom_call.1} parent=5 // pred_fallthru
        _
      %p1889 = scmp.le.s32.totalorder 2, %s29
      // Predicated region
      $region101: #{tpu_custom_call.1} parent=5 // pred_check
        %p1890 = pneg %p1889
      $region102: #{tpu_custom_call.1} parent=5 // pred_check_branch
        %1892 = sbr.rel (%p1890) target = $region104
      $region103: #{tpu_custom_call.1} parent=5 // pred_region
        %s1893 = ssub.s32 %s29, 2
        // Predicated region
        $region105: #{tpu_custom_call.1} parent=103 // pred_check
          %p1894 = pneg %p285
        $region106: #{tpu_custom_call.1} parent=103 // pred_check_branch
          %1896 = sbr.rel (%p1894) target = $region108
        $region107: #{tpu_custom_call.1} parent=103 // pred_region
          %s1897 = sand.u32 %s270, 1
          %s1898 = scalar_lea.sflag [#allocation6], %s1897
          %s1899 = sand.u32 %s270, 1
          %s1900 = smul.addr %s1899, 8
          %s1901 = scalar_lea.vmem [#allocation19], %s1900
          %1902 = dma.done %s1898, 128
        $region108: #{tpu_custom_call.1} parent=103 // pred_fallthru
          _
      $region104: #{tpu_custom_call.1} parent=5 // pred_fallthru
        _
    $region6: #{tpu_custom_call.1} parent=1 // loop_footer
      %s33 = sadd.s32 1, %s29
    $region7: #{tpu_custom_call.1} parent=1 // loop_footer_branch
      %28 = sbr.rel target = $region3
    $region8: #{tpu_custom_call.1} parent=1 // loop_exit
      _
    %1903 = vsyncpa [#allocation5], 1
    %s1904 = scalar_lea.sflag [#allocation5], 1
    %1905 = vsyncpa %s1904, 1
    %1906 = vsyncpa [#allocation8], 1
    %s1907 = scalar_lea.sflag [#allocation8], 1
    %1908 = vsyncpa %s1907, 1
    %1909 = vsyncpa [#allocation11], 1
    %s1910 = scalar_lea.sflag [#allocation11], 1
    %1911 = vsyncpa %s1910, 1
    %1912 = vsyncpa [#allocation14], 1
    %1913 = vsyncpa [#allocation17], 1
    %1914 = vsyncpa [#allocation6], 1
    %s1915 = scalar_lea.sflag [#allocation6], 1
    %1916 = vsyncpa %s1915, 1

</llo_original>
